<compile_context>
chip_gen: v7x
topology: tpu7x:2x2x1
jax: 0.10.0
libtpu: 0.0.40
codegen_flags: <defaults>
</compile_context>

<pallas_src>
import jax
import jax.numpy as jnp
from jax.experimental import pallas as pl
from jax.experimental.pallas import tpu as pltpu

PAD = 0


# ---------------------------------------------------------------------------
# Pallas kernel: fused bidirectional GRU recurrence + pointer scoring
# ---------------------------------------------------------------------------
def bigru_selector_kernel(x_ref, w_ref, s_ref, out_ref):
    """
    x_ref  : (CR + L*B, KD) bf16   rows [0:CR]    = [state0 | emb | 1 | 0-pad]
                                    rows [CR: ]    = time-major m (row = t*B + b)
    w_ref  : (4*KD, 6H)     bf16   row-blocks: [W_const+bias | W_m | W_hh_blockdiag |
                                                bhh_n (row 3*KD, cols 0:2H)]
             all gate columns permuted to [r_f, r_b, z_f, z_b, n_f, n_b]
    s_ref  : (L*2H + B, L)  f32    rows [0:L*2H]  = block-sparse t-score weight
                                    rows [L*2H: ]  = base scores, -inf at PAD
    out_ref: (B, L)         f32    p1
    """
    B, L = out_ref.shape
    H6 = w_ref.shape[1]
    H = H6 // 6
    H2, H4 = 2 * H, 4 * H
    KD = w_ref.shape[0] // 4
    CR = x_ref.shape[0] - L * B

    x = x_ref[...]
    w = w_ref[...]

    # (1) hoisted input-side matmuls: both directions, all timesteps, one MXU
    #     pass each (bf16 operands, f32 accumulation).
    gxc = jnp.dot(x[0:CR, :], w[0:KD, :],
                  preferred_element_type=jnp.float32)          # (CR, 6H); rows>=B unused
    gxm = jnp.dot(x[CR:, :], w[KD:2 * KD, :],
                  preferred_element_type=jnp.float32)          # (L*B, 6H)

    w_hh = w[2 * KD:2 * KD + H2, :]                            # (2H, 6H) bf16 block-diag
    bhh_n = w[3 * KD:3 * KD + 1, 0:H2].astype(jnp.float32)     # (1, 2H)

    gxc_rz = gxc[0:B, 0:H4]                                    # time-invariant rz pre-act
    gxc_n = gxc[0:B, H4:H6]                                    # time-invariant n  pre-act

    # (2) per-step gate pre-activations: fwd half reads timestep i, bwd half
    #     reads timestep L-1-i.  h-independent -> assembled off the serial chain.
    rz_in, n_in = [], []
    for i in range(L):
        rf = slice(i * B, (i + 1) * B)                 # forward  : timestep i
        rb = slice((L - 1 - i) * B, (L - i) * B)       # backward : timestep L-1-i
        rz_in.append(gxc_rz + jnp.concatenate(
            [gxm[rf, 0:H], gxm[rb, H:H2],
             gxm[rf, H2:3 * H], gxm[rb, 3 * H:H4]], axis=1))   # (B, 4H)
        n_in.append(gxc_n + jnp.concatenate(
            [gxm[rf, H4:5 * H], gxm[rb, 5 * H:H6]], axis=1))   # (B, 2H)

    # (3) fully-unrolled merged recurrence: one MXU push, one sigmoid, one tanh
    #     per serial step; both hidden states live in one (B, 2H) vreg block.
    h = jnp.zeros((B, H2), jnp.float32)
    hs = []
    for i in range(L):
        gh = jnp.dot(h.astype(jnp.bfloat16), w_hh,
                     preferred_element_type=jnp.float32)       # (B, 6H)
        rz = jax.nn.sigmoid(rz_in[i] + gh[:, 0:H4])            # [r_f,r_b | z_f,z_b]
        n = jnp.tanh(n_in[i] + rz[:, 0:H2] * (gh[:, H4:H6] + bhh_n))
        z = rz[:, H2:H4]
        h = (1.0 - z) * n + z * h                              # [h_f(t=i) | h_b(t=L-1-i)]
        hs.append(h)

    # (4) epilogue: one matmul replaces 2L per-step cross-lane reductions.  The
    #     (L*2H, L) weight is block-sparse and already routes h_b(step i) to
    #     output column L-1-i, so no reversal / transpose is needed here.
    hcat = jnp.concatenate(hs, axis=1)                         # (B, L*2H)
    wt_blk = s_ref[0:L * H2, :]                                # (L*2H, L)
    base = s_ref[L * H2:, :]                                   # (B, L), -inf at PAD
    out_ref[...] = base + jnp.dot(hcat, wt_blk,
                                  preferred_element_type=jnp.float32)


# ---------------------------------------------------------------------------
# Selector forward (thin XLA glue + one Pallas kernel call)
# ---------------------------------------------------------------------------
def selector_forward(params, b, tgt, state0, g, m):
    """
    b:      (B, L) int32 background token ids
    tgt:    (B,)   int32 target token ids
    state0: (B, 1, H)    decoder state  (== state[0] in the PyTorch code)
    g:      (B, L, 8H)
    m:      (B, L, 2H)
    returns (p1: (B, L) float32, state0)
    """
    B, L = b.shape
    H = params["whh_fwd_T"].shape[0]
    E = params["emb"].shape[1]
    HE = H + E
    H2, H3, H6 = 2 * H, 3 * H, 6 * H

    embedded = params["emb"][tgt]                              # (B, E); dropout = id
    const_feat = jnp.concatenate([state0[:, 0, :], embedded], axis=1)  # (B, HE)

    # ---- recurrence-independent score terms (g, m, s projections), f32, masked
    wg = params["wg"][0]
    wm = params["wm"][0]
    ws = params["ws"][0]
    wt = params["wt"][0]
    base = (jnp.einsum("blh,h->bl", g.astype(jnp.float32), wg)
            + jnp.einsum("blh,h->bl", m.astype(jnp.float32), wm + ws[HE:])
            + (const_feat @ ws[:HE])[:, None])
    base = jnp.where(b != PAD, base, -jnp.inf).astype(jnp.float32)     # (B, L)

    # ---- gate-permuted, direction-merged weights --------------------------
    def perm_cols(fwd, bwd):   # (..., 3H) x2 -> (..., 6H) [r_f,r_b,z_f,z_b,n_f,n_b]
        return jnp.concatenate([fwd[..., 0:H], bwd[..., 0:H],
                                fwd[..., H:H2], bwd[..., H:H2],
                                fwd[..., H2:H3], bwd[..., H2:H3]], axis=-1)

    wih_f, wih_b = params["wih_fwd_T"], params["wih_bwd_T"]    # (F, 3H)
    bih_f, bih_b = params["bih_fwd"], params["bih_bwd"]        # (1, 3H)
    bhh_f, bhh_b = params["bhh_fwd"], params["bhh_bwd"]        # (1, 3H)
    whh_f, whh_b = params["whh_fwd_T"], params["whh_bwd_T"]    # (H, 3H)

    # bhh for r/z folds into the time-invariant bias; bhh_n must stay inside
    # the r-multiply (PyTorch GRU semantics).
    bias_f = bih_f.at[:, 0:H2].add(bhh_f[:, 0:H2])
    bias_b = bih_b.at[:, 0:H2].add(bhh_b[:, 0:H2])
    w_const = jnp.concatenate([perm_cols(wih_f[:HE], wih_b[:HE]),
                               perm_cols(bias_f, bias_b)], axis=0)      # (HE+1, 6H)
    w_m = perm_cols(wih_f[HE:], wih_b[HE:])                             # (2H, 6H)
    zH = jnp.zeros((H, H3), jnp.float32)
    w_hh = perm_cols(jnp.concatenate([whh_f, zH], axis=0),
                     jnp.concatenate([zH, whh_b], axis=0))              # (2H, 6H) block-diag
    bhh_n = jnp.concatenate([bhh_f[:, H2:H3], bhh_b[:, H2:H3]], axis=1)  # (1, 2H)

    # ---- pack operands: 3 DMAs total ---------------------------------------
    KD = max(H2, ((HE + 1 + 15) // 16) * 16)          # shared contracting width
    CR = ((B + 15) // 16) * 16                        # bf16-tile-aligned const block

    def pad_rows(a, n):
        return jnp.zeros((n, a.shape[1]), a.dtype).at[:a.shape[0], :].set(a)

    # activation pack: [state0 | emb | 1] rows, then time-major m rows
    x_pack = jnp.zeros((CR + L * B, KD), jnp.float32)
    x_pack = x_pack.at[0:B, 0:HE].set(const_feat)
    x_pack = x_pack.at[0:B, HE].set(1.0)              # ones column -> bias row
    m_tm = jnp.transpose(m, (1, 0, 2)).reshape(L * B, H2).astype(jnp.float32)
    x_pack = x_pack.at[CR:, 0:H2].set(m_tm)
    x_pack = x_pack.astype(jnp.bfloat16)

    # weight pack: 4 KD-row blocks
    bhh_row = jnp.zeros((1, H6), jnp.float32).at[:, 0:H2].set(bhh_n)
    w_pack = jnp.concatenate([pad_rows(w_const, KD), pad_rows(w_m, KD),
                              pad_rows(w_hh, KD), pad_rows(bhh_row, KD)],
                             axis=0).astype(jnp.bfloat16)               # (4*KD, 6H)

    # score pack: block-sparse t-score weight (encodes bwd time reversal) + base
    wt_f, wt_b = wt[0:H], wt[H:H2]
    wt_blk = jnp.zeros((L * H2, L), jnp.float32)
    for i in range(L):
        wt_blk = wt_blk.at[i * H2:i * H2 + H, i].set(wt_f)              # h_f(step i) -> t=i
        wt_blk = wt_blk.at[i * H2 + H:(i + 1) * H2, L - 1 - i].set(wt_b)  # h_b(step i) -> t=L-1-i
    score_pack = jnp.concatenate([wt_blk, base], axis=0)                # (L*2H + B, L)

    p1 = pl.pallas_call(
        bigru_selector_kernel,
        out_shape=jax.ShapeDtypeStruct((B, L), jnp.float32),
        in_specs=[pl.BlockSpec(memory_space=pltpu.MemorySpace.VMEM)
                  for _ in range(3)],
        out_specs=pl.BlockSpec(memory_space=pltpu.MemorySpace.VMEM),
    )(x_pack, w_pack, score_pack)

    return p1, state0


# ---------------------------------------------------------------------------
# Pure-JAX reference (mirrors the PyTorch module directly, f32)
# ---------------------------------------------------------------------------
def selector_reference(params, b, tgt, state0, g, m):
    B, L = b.shape
    H = params["whh_fwd_T"].shape[0]
    E = params["emb"].shape[1]

    embedded = params["emb"][tgt]
    s = jnp.concatenate(
        [jnp.broadcast_to(state0, (B, L, H)),
         jnp.broadcast_to(embedded[:, None, :], (B, L, E)),
         m], axis=-1).astype(jnp.float32)

    def gru_dir(seq_tm, wih_T, bih, whh_T, bhh):
        def step(h, x):
            gx = x @ wih_T + bih
            gh = h @ whh_T + bhh
            r = jax.nn.sigmoid(gx[:, :H] + gh[:, :H])
            z = jax.nn.sigmoid(gx[:, H:2 * H] + gh[:, H:2 * H])
            n = jnp.tanh(gx[:, 2 * H:] + r * gh[:, 2 * H:])
            h = (1.0 - z) * n + z * h
            return h, h
        _, hs = jax.lax.scan(step, jnp.zeros((B, H), jnp.float32), seq_tm)
        return hs

    s_tm = jnp.transpose(s, (1, 0, 2))
    t_f = gru_dir(s_tm, params["wih_fwd_T"], params["bih_fwd"],
                  params["whh_fwd_T"], params["bhh_fwd"])
    t_b = gru_dir(s_tm[::-1], params["wih_bwd_T"], params["bih_bwd"],
                  params["whh_bwd_T"], params["bhh_bwd"])[::-1]
    t = jnp.transpose(jnp.concatenate([t_f, t_b], axis=-1), (1, 0, 2))

    p1 = (g @ params["wg"].T + m @ params["wm"].T
          + s @ params["ws"].T + t @ params["wt"].T)[..., 0]
    return jnp.where(b != PAD, p1, -jnp.inf)


# ---------------------------------------------------------------------------
# Deterministic parameter / input construction
# ---------------------------------------------------------------------------
def make_params(key, vocab, E, H):
    F = 3 * H + E  # GRU input feature size = hidden + embedding + 2*hidden
    ks = jax.random.split(key, 16)

    def rnd(k, shape, scale=0.1):
        return jax.random.normal(k, shape, dtype=jnp.float32) * scale

    emb = rnd(ks[0], (vocab, E)).at[PAD].set(0.0)   # padding_idx=PAD row is zero

    return {
        "emb": emb,
        # forward direction (stored transposed so x @ W^T is x @ W_T)
        "wih_fwd_T": rnd(ks[1], (3 * H, F)).T,
        "whh_fwd_T": rnd(ks[2], (3 * H, H)).T,
        "bih_fwd": rnd(ks[3], (1, 3 * H)),
        "bhh_fwd": rnd(ks[4], (1, 3 * H)),
        # backward direction
        "wih_bwd_T": rnd(ks[5], (3 * H, F)).T,
        "whh_bwd_T": rnd(ks[6], (3 * H, H)).T,
        "bih_bwd": rnd(ks[7], (1, 3 * H)),
        "bhh_bwd": rnd(ks[8], (1, 3 * H)),
        # bias-free pointer projections (nn.Linear(d, 1, bias=False))
        "wg": rnd(ks[9], (1, 8 * H)),
        "wm": rnd(ks[10], (1, 2 * H)),
        "ws": rnd(ks[11], (1, 3 * H + E)),
        "wt": rnd(ks[12], (1, 2 * H)),
    }


if __name__ == "__main__":
    B, L, H, E, V = 2, 8, 32, 16, 50

    key = jax.random.PRNGKey(0)
    k_par, k_b, k_tgt, k_state, k_g, k_m = jax.random.split(key, 6)

    params = make_params(k_par, V, E, H)

    # background tokens: no PAD so lengths == b_len (matches packed-GRU path)
    b = jax.random.randint(k_b, (B, L), 1, V, dtype=jnp.int32)
    tgt = jax.random.randint(k_tgt, (B,), 1, V, dtype=jnp.int32)
    state0 = jax.random.normal(k_state, (B, 1, H), dtype=jnp.float32)
    g = jax.random.normal(k_g, (B, L, 8 * H), dtype=jnp.float32)
    m = jax.random.normal(k_m, (B, L, 2 * H), dtype=jnp.float32)

    p1, state_out = jax.jit(selector_forward)(params, b, tgt, state0, g, m)
    jax.block_until_ready((p1, state_out))

    with jax.default_matmul_precision("float32"):
        p1_ref = selector_reference(params, b, tgt, state0, g, m)
    p1_ref = jax.block_until_ready(p1_ref)

    assert p1.shape == (B, L) and p1.dtype == jnp.float32
    assert bool(jnp.all(jnp.isfinite(p1)))
    # tolerance loosened vs the pure-f32 version: MXU operands are bf16
    # (f32 accumulation) per the perf review; typical error is ~1e-3.
    max_err = float(jnp.max(jnp.abs(p1 - p1_ref)))
    assert max_err < 3e-2, f"mismatch vs pure-JAX reference: {max_err}"
    print("KERNEL_OK")
</pallas_src>

<mosaic_0001>
module attributes {stable_mosaic.version = 11 : i64} {
  func.func @bigru_selector_kernel(%arg0: memref<32x64xbf16, #tpu.memory_space<vmem>>, %arg1: memref<256x192xbf16, #tpu.memory_space<vmem>>, %arg2: memref<514x8xf32, #tpu.memory_space<vmem>>, %arg3: memref<2x8xf32, #tpu.memory_space<vmem>>) attributes {dimension_semantics = [], scalar_prefetch = 0 : i64, scratch_operands = 0 : i64, tpu.core_type = #tpu.core_type<tc>} {
    %c0 = arith.constant 0 : index
    %c0_0 = arith.constant 0 : index
    %0 = vector.load %arg0[%c0, %c0_0] : memref<32x64xbf16, #tpu.memory_space<vmem>>, vector<32x64xbf16>
    %c0_1 = arith.constant 0 : index
    %c0_2 = arith.constant 0 : index
    %1 = vector.load %arg1[%c0_1, %c0_2] : memref<256x192xbf16, #tpu.memory_space<vmem>>, vector<256x192xbf16>
    %2 = vector.extract_strided_slice %0 {offsets = [0, 0], sizes = [16, 64], strides = [1, 1]} : vector<32x64xbf16> to vector<16x64xbf16>
    %3 = vector.extract_strided_slice %1 {offsets = [0, 0], sizes = [64, 192], strides = [1, 1]} : vector<256x192xbf16> to vector<64x192xbf16>
    %cst = arith.constant dense<0.000000e+00> : vector<16x192xf32>
    %4 = tpu.matmul %2, %3, %cst {dimension_numbers = #tpu.dot_dimension_numbers<[1], [0], [0], [1], [0, 0, 1, 1], [], []>} : vector<16x64xbf16>, vector<64x192xbf16>, vector<16x192xf32> -> vector<16x192xf32>
    %5 = vector.extract_strided_slice %0 {offsets = [16, 0], sizes = [16, 64], strides = [1, 1]} : vector<32x64xbf16> to vector<16x64xbf16>
    %6 = vector.extract_strided_slice %1 {offsets = [64, 0], sizes = [64, 192], strides = [1, 1]} : vector<256x192xbf16> to vector<64x192xbf16>
    %cst_3 = arith.constant dense<0.000000e+00> : vector<16x192xf32>
    %7 = tpu.matmul %5, %6, %cst_3 {dimension_numbers = #tpu.dot_dimension_numbers<[1], [0], [0], [1], [0, 0, 1, 1], [], []>} : vector<16x64xbf16>, vector<64x192xbf16>, vector<16x192xf32> -> vector<16x192xf32>
    %8 = vector.extract_strided_slice %1 {offsets = [128, 0], sizes = [64, 192], strides = [1, 1]} : vector<256x192xbf16> to vector<64x192xbf16>
    %9 = vector.extract_strided_slice %1 {offsets = [192, 0], sizes = [1, 64], strides = [1, 1]} : vector<256x192xbf16> to vector<1x64xbf16>
    %10 = arith.extf %9 : vector<1x64xbf16> to vector<1x64xf32>
    %11 = vector.extract_strided_slice %4 {offsets = [0, 0], sizes = [2, 128], strides = [1, 1]} : vector<16x192xf32> to vector<2x128xf32>
    %12 = vector.extract_strided_slice %4 {offsets = [0, 128], sizes = [2, 64], strides = [1, 1]} : vector<16x192xf32> to vector<2x64xf32>
    %13 = vector.extract_strided_slice %7 {offsets = [0, 0], sizes = [2, 32], strides = [1, 1]} : vector<16x192xf32> to vector<2x32xf32>
    %14 = vector.extract_strided_slice %7 {offsets = [14, 32], sizes = [2, 32], strides = [1, 1]} : vector<16x192xf32> to vector<2x32xf32>
    %15 = vector.extract_strided_slice %7 {offsets = [0, 64], sizes = [2, 32], strides = [1, 1]} : vector<16x192xf32> to vector<2x32xf32>
    %16 = vector.extract_strided_slice %7 {offsets = [14, 96], sizes = [2, 32], strides = [1, 1]} : vector<16x192xf32> to vector<2x32xf32>
    %17 = tpu.concatenate %13, %14, %15, %16 in 1 : vector<2x32xf32>, vector<2x32xf32>, vector<2x32xf32>, vector<2x32xf32> -> vector<2x128xf32>
    %18 = arith.addf %11, %17 : vector<2x128xf32>
    %19 = vector.extract_strided_slice %7 {offsets = [0, 128], sizes = [2, 32], strides = [1, 1]} : vector<16x192xf32> to vector<2x32xf32>
    %20 = vector.extract_strided_slice %7 {offsets = [14, 160], sizes = [2, 32], strides = [1, 1]} : vector<16x192xf32> to vector<2x32xf32>
    %21 = tpu.concatenate %19, %20 in 1 : vector<2x32xf32>, vector<2x32xf32> -> vector<2x64xf32>
    %22 = arith.addf %12, %21 : vector<2x64xf32>
    %23 = vector.extract_strided_slice %7 {offsets = [2, 0], sizes = [2, 32], strides = [1, 1]} : vector<16x192xf32> to vector<2x32xf32>
    %24 = vector.extract_strided_slice %7 {offsets = [12, 32], sizes = [2, 32], strides = [1, 1]} : vector<16x192xf32> to vector<2x32xf32>
    %25 = vector.extract_strided_slice %7 {offsets = [2, 64], sizes = [2, 32], strides = [1, 1]} : vector<16x192xf32> to vector<2x32xf32>
    %26 = vector.extract_strided_slice %7 {offsets = [12, 96], sizes = [2, 32], strides = [1, 1]} : vector<16x192xf32> to vector<2x32xf32>
    %27 = tpu.concatenate %23, %24, %25, %26 in 1 : vector<2x32xf32>, vector<2x32xf32>, vector<2x32xf32>, vector<2x32xf32> -> vector<2x128xf32>
    %28 = arith.addf %11, %27 : vector<2x128xf32>
    %29 = vector.extract_strided_slice %7 {offsets = [2, 128], sizes = [2, 32], strides = [1, 1]} : vector<16x192xf32> to vector<2x32xf32>
    %30 = vector.extract_strided_slice %7 {offsets = [12, 160], sizes = [2, 32], strides = [1, 1]} : vector<16x192xf32> to vector<2x32xf32>
    %31 = tpu.concatenate %29, %30 in 1 : vector<2x32xf32>, vector<2x32xf32> -> vector<2x64xf32>
    %32 = arith.addf %12, %31 : vector<2x64xf32>
    %33 = vector.extract_strided_slice %7 {offsets = [4, 0], sizes = [2, 32], strides = [1, 1]} : vector<16x192xf32> to vector<2x32xf32>
    %34 = vector.extract_strided_slice %7 {offsets = [10, 32], sizes = [2, 32], strides = [1, 1]} : vector<16x192xf32> to vector<2x32xf32>
    %35 = vector.extract_strided_slice %7 {offsets = [4, 64], sizes = [2, 32], strides = [1, 1]} : vector<16x192xf32> to vector<2x32xf32>
    %36 = vector.extract_strided_slice %7 {offsets = [10, 96], sizes = [2, 32], strides = [1, 1]} : vector<16x192xf32> to vector<2x32xf32>
    %37 = tpu.concatenate %33, %34, %35, %36 in 1 : vector<2x32xf32>, vector<2x32xf32>, vector<2x32xf32>, vector<2x32xf32> -> vector<2x128xf32>
    %38 = arith.addf %11, %37 : vector<2x128xf32>
    %39 = vector.extract_strided_slice %7 {offsets = [4, 128], sizes = [2, 32], strides = [1, 1]} : vector<16x192xf32> to vector<2x32xf32>
    %40 = vector.extract_strided_slice %7 {offsets = [10, 160], sizes = [2, 32], strides = [1, 1]} : vector<16x192xf32> to vector<2x32xf32>
    %41 = tpu.concatenate %39, %40 in 1 : vector<2x32xf32>, vector<2x32xf32> -> vector<2x64xf32>
    %42 = arith.addf %12, %41 : vector<2x64xf32>
    %43 = vector.extract_strided_slice %7 {offsets = [6, 0], sizes = [2, 32], strides = [1, 1]} : vector<16x192xf32> to vector<2x32xf32>
    %44 = vector.extract_strided_slice %7 {offsets = [8, 32], sizes = [2, 32], strides = [1, 1]} : vector<16x192xf32> to vector<2x32xf32>
    %45 = vector.extract_strided_slice %7 {offsets = [6, 64], sizes = [2, 32], strides = [1, 1]} : vector<16x192xf32> to vector<2x32xf32>
    %46 = vector.extract_strided_slice %7 {offsets = [8, 96], sizes = [2, 32], strides = [1, 1]} : vector<16x192xf32> to vector<2x32xf32>
    %47 = tpu.concatenate %43, %44, %45, %46 in 1 : vector<2x32xf32>, vector<2x32xf32>, vector<2x32xf32>, vector<2x32xf32> -> vector<2x128xf32>
    %48 = arith.addf %11, %47 : vector<2x128xf32>
    %49 = vector.extract_strided_slice %7 {offsets = [6, 128], sizes = [2, 32], strides = [1, 1]} : vector<16x192xf32> to vector<2x32xf32>
    %50 = vector.extract_strided_slice %7 {offsets = [8, 160], sizes = [2, 32], strides = [1, 1]} : vector<16x192xf32> to vector<2x32xf32>
    %51 = tpu.concatenate %49, %50 in 1 : vector<2x32xf32>, vector<2x32xf32> -> vector<2x64xf32>
    %52 = arith.addf %12, %51 : vector<2x64xf32>
    %53 = vector.extract_strided_slice %7 {offsets = [8, 0], sizes = [2, 32], strides = [1, 1]} : vector<16x192xf32> to vector<2x32xf32>
    %54 = vector.extract_strided_slice %7 {offsets = [6, 32], sizes = [2, 32], strides = [1, 1]} : vector<16x192xf32> to vector<2x32xf32>
    %55 = vector.extract_strided_slice %7 {offsets = [8, 64], sizes = [2, 32], strides = [1, 1]} : vector<16x192xf32> to vector<2x32xf32>
    %56 = vector.extract_strided_slice %7 {offsets = [6, 96], sizes = [2, 32], strides = [1, 1]} : vector<16x192xf32> to vector<2x32xf32>
    %57 = tpu.concatenate %53, %54, %55, %56 in 1 : vector<2x32xf32>, vector<2x32xf32>, vector<2x32xf32>, vector<2x32xf32> -> vector<2x128xf32>
    %58 = arith.addf %11, %57 : vector<2x128xf32>
    %59 = vector.extract_strided_slice %7 {offsets = [8, 128], sizes = [2, 32], strides = [1, 1]} : vector<16x192xf32> to vector<2x32xf32>
    %60 = vector.extract_strided_slice %7 {offsets = [6, 160], sizes = [2, 32], strides = [1, 1]} : vector<16x192xf32> to vector<2x32xf32>
    %61 = tpu.concatenate %59, %60 in 1 : vector<2x32xf32>, vector<2x32xf32> -> vector<2x64xf32>
    %62 = arith.addf %12, %61 : vector<2x64xf32>
    %63 = vector.extract_strided_slice %7 {offsets = [10, 0], sizes = [2, 32], strides = [1, 1]} : vector<16x192xf32> to vector<2x32xf32>
    %64 = vector.extract_strided_slice %7 {offsets = [4, 32], sizes = [2, 32], strides = [1, 1]} : vector<16x192xf32> to vector<2x32xf32>
    %65 = vector.extract_strided_slice %7 {offsets = [10, 64], sizes = [2, 32], strides = [1, 1]} : vector<16x192xf32> to vector<2x32xf32>
    %66 = vector.extract_strided_slice %7 {offsets = [4, 96], sizes = [2, 32], strides = [1, 1]} : vector<16x192xf32> to vector<2x32xf32>
    %67 = tpu.concatenate %63, %64, %65, %66 in 1 : vector<2x32xf32>, vector<2x32xf32>, vector<2x32xf32>, vector<2x32xf32> -> vector<2x128xf32>
    %68 = arith.addf %11, %67 : vector<2x128xf32>
    %69 = vector.extract_strided_slice %7 {offsets = [10, 128], sizes = [2, 32], strides = [1, 1]} : vector<16x192xf32> to vector<2x32xf32>
    %70 = vector.extract_strided_slice %7 {offsets = [4, 160], sizes = [2, 32], strides = [1, 1]} : vector<16x192xf32> to vector<2x32xf32>
    %71 = tpu.concatenate %69, %70 in 1 : vector<2x32xf32>, vector<2x32xf32> -> vector<2x64xf32>
    %72 = arith.addf %12, %71 : vector<2x64xf32>
    %73 = vector.extract_strided_slice %7 {offsets = [12, 0], sizes = [2, 32], strides = [1, 1]} : vector<16x192xf32> to vector<2x32xf32>
    %74 = vector.extract_strided_slice %7 {offsets = [2, 32], sizes = [2, 32], strides = [1, 1]} : vector<16x192xf32> to vector<2x32xf32>
    %75 = vector.extract_strided_slice %7 {offsets = [12, 64], sizes = [2, 32], strides = [1, 1]} : vector<16x192xf32> to vector<2x32xf32>
    %76 = vector.extract_strided_slice %7 {offsets = [2, 96], sizes = [2, 32], strides = [1, 1]} : vector<16x192xf32> to vector<2x32xf32>
    %77 = tpu.concatenate %73, %74, %75, %76 in 1 : vector<2x32xf32>, vector<2x32xf32>, vector<2x32xf32>, vector<2x32xf32> -> vector<2x128xf32>
    %78 = arith.addf %11, %77 : vector<2x128xf32>
    %79 = vector.extract_strided_slice %7 {offsets = [12, 128], sizes = [2, 32], strides = [1, 1]} : vector<16x192xf32> to vector<2x32xf32>
    %80 = vector.extract_strided_slice %7 {offsets = [2, 160], sizes = [2, 32], strides = [1, 1]} : vector<16x192xf32> to vector<2x32xf32>
    %81 = tpu.concatenate %79, %80 in 1 : vector<2x32xf32>, vector<2x32xf32> -> vector<2x64xf32>
    %82 = arith.addf %12, %81 : vector<2x64xf32>
    %83 = vector.extract_strided_slice %7 {offsets = [14, 0], sizes = [2, 32], strides = [1, 1]} : vector<16x192xf32> to vector<2x32xf32>
    %84 = vector.extract_strided_slice %7 {offsets = [0, 32], sizes = [2, 32], strides = [1, 1]} : vector<16x192xf32> to vector<2x32xf32>
    %85 = vector.extract_strided_slice %7 {offsets = [14, 64], sizes = [2, 32], strides = [1, 1]} : vector<16x192xf32> to vector<2x32xf32>
    %86 = vector.extract_strided_slice %7 {offsets = [0, 96], sizes = [2, 32], strides = [1, 1]} : vector<16x192xf32> to vector<2x32xf32>
    %87 = tpu.concatenate %83, %84, %85, %86 in 1 : vector<2x32xf32>, vector<2x32xf32>, vector<2x32xf32>, vector<2x32xf32> -> vector<2x128xf32>
    %88 = arith.addf %11, %87 : vector<2x128xf32>
    %89 = vector.extract_strided_slice %7 {offsets = [14, 128], sizes = [2, 32], strides = [1, 1]} : vector<16x192xf32> to vector<2x32xf32>
    %90 = vector.extract_strided_slice %7 {offsets = [0, 160], sizes = [2, 32], strides = [1, 1]} : vector<16x192xf32> to vector<2x32xf32>
    %91 = tpu.concatenate %89, %90 in 1 : vector<2x32xf32>, vector<2x32xf32> -> vector<2x64xf32>
    %92 = arith.addf %12, %91 : vector<2x64xf32>
    %cst_4 = arith.constant 0.000000e+00 : f32
    %93 = vector.broadcast %cst_4 : f32 to vector<2x64xf32>
    %94 = arith.truncf %93 : vector<2x64xf32> to vector<2x64xbf16>
    %cst_5 = arith.constant dense<0.000000e+00> : vector<2x192xf32>
    %95 = tpu.matmul %94, %8, %cst_5 {dimension_numbers = #tpu.dot_dimension_numbers<[1], [0], [0], [1], [0, 0, 1, 1], [], []>} : vector<2x64xbf16>, vector<64x192xbf16>, vector<2x192xf32> -> vector<2x192xf32>
    %96 = vector.extract_strided_slice %95 {offsets = [0, 0], sizes = [2, 128], strides = [1, 1]} : vector<2x192xf32> to vector<2x128xf32>
    %97 = arith.addf %18, %96 : vector<2x128xf32>
    %98 = arith.negf %97 : vector<2x128xf32>
    %99 = math.exp %98 : vector<2x128xf32>
    %cst_6 = arith.constant 1.000000e+00 : f32
    %100 = vector.broadcast %cst_6 : f32 to vector<2x128xf32>
    %101 = arith.addf %100, %99 : vector<2x128xf32>
    %102 = arith.divf %100, %101 : vector<2x128xf32>
    %103 = vector.extract_strided_slice %102 {offsets = [0, 0], sizes = [2, 64], strides = [1, 1]} : vector<2x128xf32> to vector<2x64xf32>
    %104 = vector.extract_strided_slice %95 {offsets = [0, 128], sizes = [2, 64], strides = [1, 1]} : vector<2x192xf32> to vector<2x64xf32>
    %105 = vector.broadcast %10 : vector<1x64xf32> to vector<2x64xf32>
    %106 = arith.addf %104, %105 : vector<2x64xf32>
    %107 = arith.mulf %103, %106 : vector<2x64xf32>
    %108 = arith.addf %22, %107 : vector<2x64xf32>
    %109 = math.tanh %108 : vector<2x64xf32>
    %110 = vector.extract_strided_slice %102 {offsets = [0, 64], sizes = [2, 64], strides = [1, 1]} : vector<2x128xf32> to vector<2x64xf32>
    %cst_7 = arith.constant 1.000000e+00 : f32
    %111 = vector.broadcast %cst_7 : f32 to vector<2x64xf32>
    %112 = arith.subf %111, %110 : vector<2x64xf32>
    %113 = arith.mulf %112, %109 : vector<2x64xf32>
    %114 = arith.mulf %110, %93 : vector<2x64xf32>
    %115 = arith.addf %113, %114 : vector<2x64xf32>
    %116 = arith.truncf %115 : vector<2x64xf32> to vector<2x64xbf16>
    %cst_8 = arith.constant dense<0.000000e+00> : vector<2x192xf32>
    %117 = tpu.matmul %116, %8, %cst_8 {dimension_numbers = #tpu.dot_dimension_numbers<[1], [0], [0], [1], [0, 0, 1, 1], [], []>} : vector<2x64xbf16>, vector<64x192xbf16>, vector<2x192xf32> -> vector<2x192xf32>
    %118 = vector.extract_strided_slice %117 {offsets = [0, 0], sizes = [2, 128], strides = [1, 1]} : vector<2x192xf32> to vector<2x128xf32>
    %119 = arith.addf %28, %118 : vector<2x128xf32>
    %120 = arith.negf %119 : vector<2x128xf32>
    %121 = math.exp %120 : vector<2x128xf32>
    %cst_9 = arith.constant 1.000000e+00 : f32
    %122 = vector.broadcast %cst_9 : f32 to vector<2x128xf32>
    %123 = arith.addf %122, %121 : vector<2x128xf32>
    %124 = arith.divf %122, %123 : vector<2x128xf32>
    %125 = vector.extract_strided_slice %124 {offsets = [0, 0], sizes = [2, 64], strides = [1, 1]} : vector<2x128xf32> to vector<2x64xf32>
    %126 = vector.extract_strided_slice %117 {offsets = [0, 128], sizes = [2, 64], strides = [1, 1]} : vector<2x192xf32> to vector<2x64xf32>
    %127 = vector.broadcast %10 : vector<1x64xf32> to vector<2x64xf32>
    %128 = arith.addf %126, %127 : vector<2x64xf32>
    %129 = arith.mulf %125, %128 : vector<2x64xf32>
    %130 = arith.addf %32, %129 : vector<2x64xf32>
    %131 = math.tanh %130 : vector<2x64xf32>
    %132 = vector.extract_strided_slice %124 {offsets = [0, 64], sizes = [2, 64], strides = [1, 1]} : vector<2x128xf32> to vector<2x64xf32>
    %cst_10 = arith.constant 1.000000e+00 : f32
    %133 = vector.broadcast %cst_10 : f32 to vector<2x64xf32>
    %134 = arith.subf %133, %132 : vector<2x64xf32>
    %135 = arith.mulf %134, %131 : vector<2x64xf32>
    %136 = arith.mulf %132, %115 : vector<2x64xf32>
    %137 = arith.addf %135, %136 : vector<2x64xf32>
    %138 = arith.truncf %137 : vector<2x64xf32> to vector<2x64xbf16>
    %cst_11 = arith.constant dense<0.000000e+00> : vector<2x192xf32>
    %139 = tpu.matmul %138, %8, %cst_11 {dimension_numbers = #tpu.dot_dimension_numbers<[1], [0], [0], [1], [0, 0, 1, 1], [], []>} : vector<2x64xbf16>, vector<64x192xbf16>, vector<2x192xf32> -> vector<2x192xf32>
    %140 = vector.extract_strided_slice %139 {offsets = [0, 0], sizes = [2, 128], strides = [1, 1]} : vector<2x192xf32> to vector<2x128xf32>
    %141 = arith.addf %38, %140 : vector<2x128xf32>
    %142 = arith.negf %141 : vector<2x128xf32>
    %143 = math.exp %142 : vector<2x128xf32>
    %cst_12 = arith.constant 1.000000e+00 : f32
    %144 = vector.broadcast %cst_12 : f32 to vector<2x128xf32>
    %145 = arith.addf %144, %143 : vector<2x128xf32>
    %146 = arith.divf %144, %145 : vector<2x128xf32>
    %147 = vector.extract_strided_slice %146 {offsets = [0, 0], sizes = [2, 64], strides = [1, 1]} : vector<2x128xf32> to vector<2x64xf32>
    %148 = vector.extract_strided_slice %139 {offsets = [0, 128], sizes = [2, 64], strides = [1, 1]} : vector<2x192xf32> to vector<2x64xf32>
    %149 = vector.broadcast %10 : vector<1x64xf32> to vector<2x64xf32>
    %150 = arith.addf %148, %149 : vector<2x64xf32>
    %151 = arith.mulf %147, %150 : vector<2x64xf32>
    %152 = arith.addf %42, %151 : vector<2x64xf32>
    %153 = math.tanh %152 : vector<2x64xf32>
    %154 = vector.extract_strided_slice %146 {offsets = [0, 64], sizes = [2, 64], strides = [1, 1]} : vector<2x128xf32> to vector<2x64xf32>
    %cst_13 = arith.constant 1.000000e+00 : f32
    %155 = vector.broadcast %cst_13 : f32 to vector<2x64xf32>
    %156 = arith.subf %155, %154 : vector<2x64xf32>
    %157 = arith.mulf %156, %153 : vector<2x64xf32>
    %158 = arith.mulf %154, %137 : vector<2x64xf32>
    %159 = arith.addf %157, %158 : vector<2x64xf32>
    %160 = arith.truncf %159 : vector<2x64xf32> to vector<2x64xbf16>
    %cst_14 = arith.constant dense<0.000000e+00> : vector<2x192xf32>
    %161 = tpu.matmul %160, %8, %cst_14 {dimension_numbers = #tpu.dot_dimension_numbers<[1], [0], [0], [1], [0, 0, 1, 1], [], []>} : vector<2x64xbf16>, vector<64x192xbf16>, vector<2x192xf32> -> vector<2x192xf32>
    %162 = vector.extract_strided_slice %161 {offsets = [0, 0], sizes = [2, 128], strides = [1, 1]} : vector<2x192xf32> to vector<2x128xf32>
    %163 = arith.addf %48, %162 : vector<2x128xf32>
    %164 = arith.negf %163 : vector<2x128xf32>
    %165 = math.exp %164 : vector<2x128xf32>
    %cst_15 = arith.constant 1.000000e+00 : f32
    %166 = vector.broadcast %cst_15 : f32 to vector<2x128xf32>
    %167 = arith.addf %166, %165 : vector<2x128xf32>
    %168 = arith.divf %166, %167 : vector<2x128xf32>
    %169 = vector.extract_strided_slice %168 {offsets = [0, 0], sizes = [2, 64], strides = [1, 1]} : vector<2x128xf32> to vector<2x64xf32>
    %170 = vector.extract_strided_slice %161 {offsets = [0, 128], sizes = [2, 64], strides = [1, 1]} : vector<2x192xf32> to vector<2x64xf32>
    %171 = vector.broadcast %10 : vector<1x64xf32> to vector<2x64xf32>
    %172 = arith.addf %170, %171 : vector<2x64xf32>
    %173 = arith.mulf %169, %172 : vector<2x64xf32>
    %174 = arith.addf %52, %173 : vector<2x64xf32>
    %175 = math.tanh %174 : vector<2x64xf32>
    %176 = vector.extract_strided_slice %168 {offsets = [0, 64], sizes = [2, 64], strides = [1, 1]} : vector<2x128xf32> to vector<2x64xf32>
    %cst_16 = arith.constant 1.000000e+00 : f32
    %177 = vector.broadcast %cst_16 : f32 to vector<2x64xf32>
    %178 = arith.subf %177, %176 : vector<2x64xf32>
    %179 = arith.mulf %178, %175 : vector<2x64xf32>
    %180 = arith.mulf %176, %159 : vector<2x64xf32>
    %181 = arith.addf %179, %180 : vector<2x64xf32>
    %182 = arith.truncf %181 : vector<2x64xf32> to vector<2x64xbf16>
    %cst_17 = arith.constant dense<0.000000e+00> : vector<2x192xf32>
    %183 = tpu.matmul %182, %8, %cst_17 {dimension_numbers = #tpu.dot_dimension_numbers<[1], [0], [0], [1], [0, 0, 1, 1], [], []>} : vector<2x64xbf16>, vector<64x192xbf16>, vector<2x192xf32> -> vector<2x192xf32>
    %184 = vector.extract_strided_slice %183 {offsets = [0, 0], sizes = [2, 128], strides = [1, 1]} : vector<2x192xf32> to vector<2x128xf32>
    %185 = arith.addf %58, %184 : vector<2x128xf32>
    %186 = arith.negf %185 : vector<2x128xf32>
    %187 = math.exp %186 : vector<2x128xf32>
    %cst_18 = arith.constant 1.000000e+00 : f32
    %188 = vector.broadcast %cst_18 : f32 to vector<2x128xf32>
    %189 = arith.addf %188, %187 : vector<2x128xf32>
    %190 = arith.divf %188, %189 : vector<2x128xf32>
    %191 = vector.extract_strided_slice %190 {offsets = [0, 0], sizes = [2, 64], strides = [1, 1]} : vector<2x128xf32> to vector<2x64xf32>
    %192 = vector.extract_strided_slice %183 {offsets = [0, 128], sizes = [2, 64], strides = [1, 1]} : vector<2x192xf32> to vector<2x64xf32>
    %193 = vector.broadcast %10 : vector<1x64xf32> to vector<2x64xf32>
    %194 = arith.addf %192, %193 : vector<2x64xf32>
    %195 = arith.mulf %191, %194 : vector<2x64xf32>
    %196 = arith.addf %62, %195 : vector<2x64xf32>
    %197 = math.tanh %196 : vector<2x64xf32>
    %198 = vector.extract_strided_slice %190 {offsets = [0, 64], sizes = [2, 64], strides = [1, 1]} : vector<2x128xf32> to vector<2x64xf32>
    %cst_19 = arith.constant 1.000000e+00 : f32
    %199 = vector.broadcast %cst_19 : f32 to vector<2x64xf32>
    %200 = arith.subf %199, %198 : vector<2x64xf32>
    %201 = arith.mulf %200, %197 : vector<2x64xf32>
    %202 = arith.mulf %198, %181 : vector<2x64xf32>
    %203 = arith.addf %201, %202 : vector<2x64xf32>
    %204 = arith.truncf %203 : vector<2x64xf32> to vector<2x64xbf16>
    %cst_20 = arith.constant dense<0.000000e+00> : vector<2x192xf32>
    %205 = tpu.matmul %204, %8, %cst_20 {dimension_numbers = #tpu.dot_dimension_numbers<[1], [0], [0], [1], [0, 0, 1, 1], [], []>} : vector<2x64xbf16>, vector<64x192xbf16>, vector<2x192xf32> -> vector<2x192xf32>
    %206 = vector.extract_strided_slice %205 {offsets = [0, 0], sizes = [2, 128], strides = [1, 1]} : vector<2x192xf32> to vector<2x128xf32>
    %207 = arith.addf %68, %206 : vector<2x128xf32>
    %208 = arith.negf %207 : vector<2x128xf32>
    %209 = math.exp %208 : vector<2x128xf32>
    %cst_21 = arith.constant 1.000000e+00 : f32
    %210 = vector.broadcast %cst_21 : f32 to vector<2x128xf32>
    %211 = arith.addf %210, %209 : vector<2x128xf32>
    %212 = arith.divf %210, %211 : vector<2x128xf32>
    %213 = vector.extract_strided_slice %212 {offsets = [0, 0], sizes = [2, 64], strides = [1, 1]} : vector<2x128xf32> to vector<2x64xf32>
    %214 = vector.extract_strided_slice %205 {offsets = [0, 128], sizes = [2, 64], strides = [1, 1]} : vector<2x192xf32> to vector<2x64xf32>
    %215 = vector.broadcast %10 : vector<1x64xf32> to vector<2x64xf32>
    %216 = arith.addf %214, %215 : vector<2x64xf32>
    %217 = arith.mulf %213, %216 : vector<2x64xf32>
    %218 = arith.addf %72, %217 : vector<2x64xf32>
    %219 = math.tanh %218 : vector<2x64xf32>
    %220 = vector.extract_strided_slice %212 {offsets = [0, 64], sizes = [2, 64], strides = [1, 1]} : vector<2x128xf32> to vector<2x64xf32>
    %cst_22 = arith.constant 1.000000e+00 : f32
    %221 = vector.broadcast %cst_22 : f32 to vector<2x64xf32>
    %222 = arith.subf %221, %220 : vector<2x64xf32>
    %223 = arith.mulf %222, %219 : vector<2x64xf32>
    %224 = arith.mulf %220, %203 : vector<2x64xf32>
    %225 = arith.addf %223, %224 : vector<2x64xf32>
    %226 = arith.truncf %225 : vector<2x64xf32> to vector<2x64xbf16>
    %cst_23 = arith.constant dense<0.000000e+00> : vector<2x192xf32>
    %227 = tpu.matmul %226, %8, %cst_23 {dimension_numbers = #tpu.dot_dimension_numbers<[1], [0], [0], [1], [0, 0, 1, 1], [], []>} : vector<2x64xbf16>, vector<64x192xbf16>, vector<2x192xf32> -> vector<2x192xf32>
    %228 = vector.extract_strided_slice %227 {offsets = [0, 0], sizes = [2, 128], strides = [1, 1]} : vector<2x192xf32> to vector<2x128xf32>
    %229 = arith.addf %78, %228 : vector<2x128xf32>
    %230 = arith.negf %229 : vector<2x128xf32>
    %231 = math.exp %230 : vector<2x128xf32>
    %cst_24 = arith.constant 1.000000e+00 : f32
    %232 = vector.broadcast %cst_24 : f32 to vector<2x128xf32>
    %233 = arith.addf %232, %231 : vector<2x128xf32>
    %234 = arith.divf %232, %233 : vector<2x128xf32>
    %235 = vector.extract_strided_slice %234 {offsets = [0, 0], sizes = [2, 64], strides = [1, 1]} : vector<2x128xf32> to vector<2x64xf32>
    %236 = vector.extract_strided_slice %227 {offsets = [0, 128], sizes = [2, 64], strides = [1, 1]} : vector<2x192xf32> to vector<2x64xf32>
    %237 = vector.broadcast %10 : vector<1x64xf32> to vector<2x64xf32>
    %238 = arith.addf %236, %237 : vector<2x64xf32>
    %239 = arith.mulf %235, %238 : vector<2x64xf32>
    %240 = arith.addf %82, %239 : vector<2x64xf32>
    %241 = math.tanh %240 : vector<2x64xf32>
    %242 = vector.extract_strided_slice %234 {offsets = [0, 64], sizes = [2, 64], strides = [1, 1]} : vector<2x128xf32> to vector<2x64xf32>
    %cst_25 = arith.constant 1.000000e+00 : f32
    %243 = vector.broadcast %cst_25 : f32 to vector<2x64xf32>
    %244 = arith.subf %243, %242 : vector<2x64xf32>
    %245 = arith.mulf %244, %241 : vector<2x64xf32>
    %246 = arith.mulf %242, %225 : vector<2x64xf32>
    %247 = arith.addf %245, %246 : vector<2x64xf32>
    %248 = arith.truncf %247 : vector<2x64xf32> to vector<2x64xbf16>
    %cst_26 = arith.constant dense<0.000000e+00> : vector<2x192xf32>
    %249 = tpu.matmul %248, %8, %cst_26 {dimension_numbers = #tpu.dot_dimension_numbers<[1], [0], [0], [1], [0, 0, 1, 1], [], []>} : vector<2x64xbf16>, vector<64x192xbf16>, vector<2x192xf32> -> vector<2x192xf32>
    %250 = vector.extract_strided_slice %249 {offsets = [0, 0], sizes = [2, 128], strides = [1, 1]} : vector<2x192xf32> to vector<2x128xf32>
    %251 = arith.addf %88, %250 : vector<2x128xf32>
    %252 = arith.negf %251 : vector<2x128xf32>
    %253 = math.exp %252 : vector<2x128xf32>
    %cst_27 = arith.constant 1.000000e+00 : f32
    %254 = vector.broadcast %cst_27 : f32 to vector<2x128xf32>
    %255 = arith.addf %254, %253 : vector<2x128xf32>
    %256 = arith.divf %254, %255 : vector<2x128xf32>
    %257 = vector.extract_strided_slice %256 {offsets = [0, 0], sizes = [2, 64], strides = [1, 1]} : vector<2x128xf32> to vector<2x64xf32>
    %258 = vector.extract_strided_slice %249 {offsets = [0, 128], sizes = [2, 64], strides = [1, 1]} : vector<2x192xf32> to vector<2x64xf32>
    %259 = vector.broadcast %10 : vector<1x64xf32> to vector<2x64xf32>
    %260 = arith.addf %258, %259 : vector<2x64xf32>
    %261 = arith.mulf %257, %260 : vector<2x64xf32>
    %262 = arith.addf %92, %261 : vector<2x64xf32>
    %263 = math.tanh %262 : vector<2x64xf32>
    %264 = vector.extract_strided_slice %256 {offsets = [0, 64], sizes = [2, 64], strides = [1, 1]} : vector<2x128xf32> to vector<2x64xf32>
    %cst_28 = arith.constant 1.000000e+00 : f32
    %265 = vector.broadcast %cst_28 : f32 to vector<2x64xf32>
    %266 = arith.subf %265, %264 : vector<2x64xf32>
    %267 = arith.mulf %266, %263 : vector<2x64xf32>
    %268 = arith.mulf %264, %247 : vector<2x64xf32>
    %269 = arith.addf %267, %268 : vector<2x64xf32>
    %270 = tpu.concatenate %115, %137, %159, %181, %203, %225, %247, %269 in 1 : vector<2x64xf32>, vector<2x64xf32>, vector<2x64xf32>, vector<2x64xf32>, vector<2x64xf32>, vector<2x64xf32>, vector<2x64xf32>, vector<2x64xf32> -> vector<2x512xf32>
    %c0_29 = arith.constant 0 : index
    %c0_30 = arith.constant 0 : index
    %271 = vector.load %arg2[%c0_29, %c0_30] : memref<514x8xf32, #tpu.memory_space<vmem>>, vector<512x8xf32>
    %c512 = arith.constant 512 : index
    %c0_31 = arith.constant 0 : index
    %272 = vector.load %arg2[%c512, %c0_31] : memref<514x8xf32, #tpu.memory_space<vmem>>, vector<2x8xf32>
    %cst_32 = arith.constant dense<0.000000e+00> : vector<2x8xf32>
    %273 = tpu.matmul %270, %271, %cst_32 {dimension_numbers = #tpu.dot_dimension_numbers<[1], [0], [0], [1], [0, 0, 1, 1], [], []>} : vector<2x512xf32>, vector<512x8xf32>, vector<2x8xf32> -> vector<2x8xf32>
    %274 = arith.addf %272, %273 : vector<2x8xf32>
    %c0_33 = arith.constant 0 : index
    %c0_34 = arith.constant 0 : index
    %275 = vector.load %arg3[%c0_33, %c0_34] : memref<2x8xf32, #tpu.memory_space<vmem>>, vector<2x8xf32>
    tpu.vector_store %arg3[%c0_33, %c0_34], %274 {strides = array<i32>} : memref<2x8xf32, #tpu.memory_space<vmem>>, vector<2x8xf32>,
    return
  }
}

</mosaic_0001>

<llo_original>
// kernel: selector_forward.1
$region0: #{selector_forward.1}
  #allocation0 [shape = 'u32[]', space=smem, size = 0x4, offset = 0x4, fixed_abs, tag = 'smem constant byte address 0x4 - core index']
  #allocation1 [shape = 'u32[144,128]{1,0:T(1,128)}', space=vmem, size = 0x12000, scoped, tag = 'internal scratch']
  %s0 = inlined_call_operand.vmem [shape: bf16[32,64], index: 0, kind: input, shape index: {}]
  %s1 = inlined_call_operand.vmem [shape: bf16[256,192], index: 1, kind: input, shape index: {}]
  %s2 = inlined_call_operand.vmem [shape: f32[514,8], index: 2, kind: input, shape index: {}]
  %s3 = inlined_call_operand.hbm [shape: f32[2,8], index: 3, kind: output, shape index: {}]
  %s4 = sld [smem:[#allocation0]]
  $region22: #{selector_forward.1} parent=0
    _
  %s6 = ssub.s32 1, %s4
  %s7 = scalar_select 0, %s6, %s4
  $region1: #{selector_forward.1} parent=0
    #allocation2 [shape = 'u8[1024]{0}', space=vmem, size = 0x400, scoped, tag = 'output window, operand 0, single buffered']
    #allocation3 [shape = 's32[1]{0}', space=sflag, size = 0x4, scoped, tag = 'scoped memory for selector_forward.1']
    %8 = vsyncpa [#allocation3], 0
    // Predicated region
    $region2: #{selector_forward.1} parent=1 // pred_check
      _
    $region3: #{selector_forward.1} parent=1 // pred_check_branch
      %10 = sbr.rel (0) target = $region5
    $region4: #{selector_forward.1} parent=1 // pred_region
      _
    $region5: #{selector_forward.1} parent=1 // pred_fallthru
      _
    // Predicated region
    $region6: #{selector_forward.1} parent=1 // pred_check
      _
    $region7: #{selector_forward.1} parent=1 // pred_check_branch
      %12 = sbr.rel (0) target = $region9
    $region8: #{selector_forward.1} parent=1 // pred_region
      _
    $region9: #{selector_forward.1} parent=1 // pred_fallthru
      _
    // Predicated region
    $region10: #{selector_forward.1} parent=1 // pred_check
      _
    $region11: #{selector_forward.1} parent=1 // pred_check_branch
      %14 = sbr.rel (0) target = $region13
    $region12: #{selector_forward.1} parent=1 // pred_region
      _
    $region13: #{selector_forward.1} parent=1 // pred_fallthru
      _
    %v16 = vld [vmem:[%s0] sm:$0xf]
    %v17 = vld [vmem:[%s0 + $0x4] sm:$0xf]
    %v18 = vld [vmem:[%s0 + $0x8] sm:$0xf]
    %v19 = vld [vmem:[%s0 + $0xc] sm:$0xf]
    %v20 = vld [vmem:[%s1] sm:$0xff]
    %v21 = vld [vmem:[%s1 + $0x8] sm:$0xff]
    %v22 = vld [vmem:[%s1 + $0x10] sm:$0xff]
    %v23 = vld [vmem:[%s1 + $0x18] sm:$0xff]
    %v24 = vld [vmem:[%s1 + $0x20] sm:$0xff]
    %v25 = vld [vmem:[%s1 + $0x28] sm:$0xff]
    %v26 = vld [vmem:[%s1 + $0x30] sm:$0xff]
    %v27 = vld [vmem:[%s1 + $0x38] sm:$0xff]
    %v28 = vld [vmem:[%s1 + $0x40] sm:$0xff]
    %v29 = vld [vmem:[%s1 + $0x48] sm:$0xff]
    %v30 = vld [vmem:[%s1 + $0x50] sm:$0xff]
    %v31 = vld [vmem:[%s1 + $0x58] sm:$0xff]
    %v32 = vld [vmem:[%s1 + $0x60] sm:$0xff]
    %v33 = vld [vmem:[%s1 + $0x68] sm:$0xff]
    %v34 = vld [vmem:[%s1 + $0x70] sm:$0xff]
    %v35 = vld [vmem:[%s1 + $0x78] sm:$0xff]
    %v36 = vld [vmem:[%s1 + $0x80] sm:$0xff]
    %v37 = vld [vmem:[%s1 + $0x88] sm:$0xff]
    %v38 = vld [vmem:[%s1 + $0x90] sm:$0xff]
    %v39 = vld [vmem:[%s1 + $0x98] sm:$0xff]
    %v40 = vld [vmem:[%s1 + $0xa0] sm:$0xff]
    %v41 = vld [vmem:[%s1 + $0xa8] sm:$0xff]
    %v42 = vld [vmem:[%s1 + $0xb0] sm:$0xff]
    %v43 = vld [vmem:[%s1 + $0xb8] sm:$0xff]
    %v44 = vld [vmem:[%s1 + $0xc0] sm:$0xff]
    %v47 = vunpack.c.l.b16 %v16
    %v48 = vunpack.c.l.b16 %v17
    %v49 = vpack.c.b16 %v48, %v47
    %v58 = vunpack.c.l.b16 %v20
    %v59 = vunpack.c.h.b16 %v20
    %v60 = vunpack.c.l.b16 %v21
    %v61 = vunpack.c.h.b16 %v21
    %v62 = vunpack.c.l.b16 %v22
    %v63 = vunpack.c.h.b16 %v22
    %v64 = vunpack.c.l.b16 %v23
    %v65 = vunpack.c.h.b16 %v23
    %v66 = vunpack.c.l.b16 %v24
    %v67 = vunpack.c.h.b16 %v24
    %v68 = vunpack.c.l.b16 %v25
    %v69 = vunpack.c.h.b16 %v25
    %v70 = vunpack.c.l.b16 %v26
    %v71 = vunpack.c.h.b16 %v26
    %v72 = vunpack.c.l.b16 %v27
    %v73 = vunpack.c.h.b16 %v27
    %v74 = vpack.c.b16 %v60, %v58
    %v75 = vpack.c.b16 %v61, %v59
    %v76 = vpack.c.b16 %v64, %v62
    %v77 = vpack.c.b16 %v65, %v63
    %v78 = vpack.c.b16 %v68, %v66
    %v79 = vpack.c.b16 %v69, %v67
    %v80 = vpack.c.b16 %v72, %v70
    %v81 = vpack.c.b16 %v73, %v71
    %vm90 = vcmask 523264
    %v92 = vsel %vm90, %v49, 0
    %94 = vmatprep.subr.bf16.mxu0 %v75
    %95 = vmatpush1.bf16.msra.mxu0 %v74
    %96 = vmatprep.subr.bf16.mxu0 %v77
    %97 = vmatpush1.bf16.msra.mxu0 %v76
    %98 = vmatprep.subr.bf16.mxu0 %v79
    %99 = vmatpush1.bf16.msra.mxu0 %v78
    %100 = vmatprep.subr.bf16.mxu0 %v81
    %101 = vmatpush1.bf16.msra.mxu0 %v80
    %102 = vmatprep.subr.bf16.mxu0 0
    %103 = vmatpush1.bf16.msra.mxu0 0
    %104 = vmatprep.subr.bf16.mxu0 0
    %105 = vmatpush1.bf16.msra.mxu0 0
    %106 = vmatprep.subr.bf16.mxu0 0
    %107 = vmatpush1.bf16.msra.mxu0 0
    %108 = vmatprep.subr.bf16.mxu0 0
    %109 = vmatpush1.bf16.msra.mxu0 0
    %110 = vmatprep.subr.bf16.mxu0 0
    %111 = vmatpush1.bf16.msra.mxu0 0
    %112 = vmatprep.subr.bf16.mxu0 0
    %113 = vmatpush1.bf16.msra.mxu0 0
    %114 = vmatprep.subr.bf16.mxu0 0
    %115 = vmatpush1.bf16.msra.mxu0 0
    %116 = vmatprep.subr.bf16.mxu0 0
    %117 = vmatpush1.bf16.msra.mxu0 0
    %118 = vmatprep.subr.bf16.mxu0 0
    %119 = vmatpush1.bf16.msra.mxu0 0
    %120 = vmatprep.subr.bf16.mxu0 0
    %121 = vmatpush1.bf16.msra.mxu0 0
    %122 = vmatprep.subr.bf16.mxu0 0
    %123 = vmatpush1.bf16.msra.mxu0 0
    %124 = vmatprep.subr.bf16.mxu0 0
    %125 = vmatpush1.bf16.msra.mxu0 0
    %126 = vmatprep.mubr.bf16.mxu0 0
    %127 = vmatmul.mubr.bf16.gmra.mrb[0].mxu0 %v92
    %v128 = vpop.f32.mrb[0].mxu0
    %v129 = vadd.f32 0.0, %v128
    %v130 = vpop.f32.mrb[0].mxu0
    %v131 = vadd.f32 0.0, %v130
    %v132 = vpop.f32.mrb[0].mxu0
    %v133 = vpop.f32.mrb[0].mxu0
    %134 = vdwg.mxu0
    %v137 = vunpack.c.l.b16 %v18
    %v138 = vunpack.c.l.b16 %v19
    %v139 = vpack.c.b16 %v138, %v137
    %v148 = vunpack.c.l.b16 %v28
    %v149 = vunpack.c.h.b16 %v28
    %v150 = vunpack.c.l.b16 %v29
    %v151 = vunpack.c.h.b16 %v29
    %v152 = vunpack.c.l.b16 %v30
    %v153 = vunpack.c.h.b16 %v30
    %v154 = vunpack.c.l.b16 %v31
    %v155 = vunpack.c.h.b16 %v31
    %v156 = vunpack.c.l.b16 %v32
    %v157 = vunpack.c.h.b16 %v32
    %v158 = vunpack.c.l.b16 %v33
    %v159 = vunpack.c.h.b16 %v33
    %v160 = vunpack.c.l.b16 %v34
    %v161 = vunpack.c.h.b16 %v34
    %v162 = vunpack.c.l.b16 %v35
    %v163 = vunpack.c.h.b16 %v35
    %v164 = vpack.c.b16 %v150, %v148
    %v165 = vpack.c.b16 %v151, %v149
    %v166 = vpack.c.b16 %v154, %v152
    %v167 = vpack.c.b16 %v155, %v153
    %v168 = vpack.c.b16 %v158, %v156
    %v169 = vpack.c.b16 %v159, %v157
    %v170 = vpack.c.b16 %v162, %v160
    %v171 = vpack.c.b16 %v163, %v161
    %v181 = vsel %vm90, %v139, 0
    %183 = vmatprep.subr.bf16.mxu0 %v165
    %184 = vmatpush1.bf16.msra.mxu0 %v164
    %185 = vmatprep.subr.bf16.mxu0 %v167
    %186 = vmatpush1.bf16.msra.mxu0 %v166
    %187 = vmatprep.subr.bf16.mxu0 %v169
    %188 = vmatpush1.bf16.msra.mxu0 %v168
    %189 = vmatprep.subr.bf16.mxu0 %v171
    %190 = vmatpush1.bf16.msra.mxu0 %v170
    %191 = vmatprep.subr.bf16.mxu0 0
    %192 = vmatpush1.bf16.msra.mxu0 0
    %193 = vmatprep.subr.bf16.mxu0 0
    %194 = vmatpush1.bf16.msra.mxu0 0
    %195 = vmatprep.subr.bf16.mxu0 0
    %196 = vmatpush1.bf16.msra.mxu0 0
    %197 = vmatprep.subr.bf16.mxu0 0
    %198 = vmatpush1.bf16.msra.mxu0 0
    %199 = vmatprep.subr.bf16.mxu0 0
    %200 = vmatpush1.bf16.msra.mxu0 0
    %201 = vmatprep.subr.bf16.mxu0 0
    %202 = vmatpush1.bf16.msra.mxu0 0
    %203 = vmatprep.subr.bf16.mxu0 0
    %204 = vmatpush1.bf16.msra.mxu0 0
    %205 = vmatprep.subr.bf16.mxu0 0
    %206 = vmatpush1.bf16.msra.mxu0 0
    %207 = vmatprep.subr.bf16.mxu0 0
    %208 = vmatpush1.bf16.msra.mxu0 0
    %209 = vmatprep.subr.bf16.mxu0 0
    %210 = vmatpush1.bf16.msra.mxu0 0
    %211 = vmatprep.subr.bf16.mxu0 0
    %212 = vmatpush1.bf16.msra.mxu0 0
    %213 = vmatprep.subr.bf16.mxu0 0
    %214 = vmatpush1.bf16.msra.mxu0 0
    %215 = vmatprep.mubr.bf16.mxu0 0
    %216 = vmatmul.mubr.bf16.gmra.mrb[0].mxu0 %v181
    %v217 = vpop.f32.mrb[0].mxu0
    %v218 = vadd.f32 0.0, %v217
    %v219 = vpop.f32.mrb[0].mxu0
    %v220 = vadd.f32 0.0, %v219
    %v221 = vpop.f32.mrb[0].mxu0
    %v222 = vadd.f32 0.0, %v221
    %v223 = vpop.f32.mrb[0].mxu0
    %v224 = vadd.f32 0.0, %v223
    %225 = vdwg.mxu0
    %v226 = vunpack.c.l.bf16 %v44
    %v228 = vrot.slane %v222, 6
    %vm230 = vcmask 261120
    %v231 = vsel %vm230, %v218, %v228
    %v232 = vsel %vm90, %v231, %v218
    %vm233 = vcmask 785408
    %v234 = vsel %vm233, %v232, %v228
    %v235 = vadd.f32 %v129, %v234
    %v237 = vrot.slane %v224, 6
    %v239 = vsel %vm230, %v220, %v237
    %v240 = vadd.f32 %v131, %v239
    %v241 = vrot.slane %v222, 2
    %v243 = vsel %vm230, %v218, %v241
    %v244 = vsel %vm90, %v243, %v218
    %v245 = vsel %vm233, %v244, %v241
    %v247 = vrot.slane %v245, 2
    %v249 = vadd.f32 %v129, %v247
    %v250 = vrot.slane %v224, 2
    %v252 = vsel %vm230, %v220, %v250
    %v254 = vrot.slane %v252, 2
    %v256 = vadd.f32 %v131, %v254
    %v258 = vrot.slane %v234, 4
    %v260 = vadd.f32 %v129, %v258
    %v262 = vrot.slane %v239, 4
    %v264 = vadd.f32 %v131, %v262
    %v265 = vrot.slane %v245, 6
    %v267 = vadd.f32 %v129, %v265
    %v268 = vrot.slane %v252, 6
    %v270 = vadd.f32 %v131, %v268
    %v272 = vrot.slane %v218, 6
    %v274 = vsel %vm230, %v222, %v272
    %v275 = vsel %vm90, %v274, %v222
    %v276 = vsel %vm233, %v275, %v272
    %v277 = vadd.f32 %v129, %v276
    %v279 = vrot.slane %v220, 6
    %v281 = vsel %vm230, %v224, %v279
    %v282 = vadd.f32 %v131, %v281
    %v283 = vrot.slane %v218, 2
    %v285 = vsel %vm230, %v222, %v283
    %v286 = vsel %vm90, %v285, %v222
    %v287 = vsel %vm233, %v286, %v283
    %v289 = vrot.slane %v287, 2
    %v291 = vadd.f32 %v129, %v289
    %v292 = vrot.slane %v220, 2
    %v294 = vsel %vm230, %v224, %v292
    %v296 = vrot.slane %v294, 2
    %v298 = vadd.f32 %v131, %v296
    %v300 = vrot.slane %v276, 4
    %v302 = vadd.f32 %v129, %v300
    %v304 = vrot.slane %v281, 4
    %v306 = vadd.f32 %v131, %v304
    %v307 = vrot.slane %v287, 6
    %v309 = vadd.f32 %v129, %v307
    %v310 = vrot.slane %v294, 6
    %v312 = vadd.f32 %v131, %v310
    %v321 = vunpack.c.l.b16 %v36
    %v322 = vunpack.c.h.b16 %v36
    %v323 = vunpack.c.l.b16 %v37
    %v324 = vunpack.c.h.b16 %v37
    %v325 = vunpack.c.l.b16 %v38
    %v326 = vunpack.c.h.b16 %v38
    %v327 = vunpack.c.l.b16 %v39
    %v328 = vunpack.c.h.b16 %v39
    %v329 = vunpack.c.l.b16 %v40
    %v330 = vunpack.c.h.b16 %v40
    %v331 = vunpack.c.l.b16 %v41
    %v332 = vunpack.c.h.b16 %v41
    %v333 = vunpack.c.l.b16 %v42
    %v334 = vunpack.c.h.b16 %v42
    %v335 = vunpack.c.l.b16 %v43
    %v336 = vunpack.c.h.b16 %v43
    %v337 = vpack.c.b16 %v323, %v321
    %v338 = vpack.c.b16 %v324, %v322
    %v339 = vpack.c.b16 %v327, %v325
    %v340 = vpack.c.b16 %v328, %v326
    %v341 = vpack.c.b16 %v331, %v329
    %v342 = vpack.c.b16 %v332, %v330
    %v343 = vpack.c.b16 %v335, %v333
    %v344 = vpack.c.b16 %v336, %v334
    %v354 = vsel %vm90, 0, 0
    %356 = vmatprep.subr.bf16.mxu0 %v338
    %357 = vmatpush1.bf16.msra.mxu0 %v337
    %358 = vmatprep.subr.bf16.mxu0 %v340
    %359 = vmatpush1.bf16.msra.mxu0 %v339
    %360 = vmatprep.subr.bf16.mxu0 %v342
    %361 = vmatpush1.bf16.msra.mxu0 %v341
    %362 = vmatprep.subr.bf16.mxu0 %v344
    %363 = vmatpush1.bf16.msra.mxu0 %v343
    %364 = vmatprep.subr.bf16.mxu0 0
    %365 = vmatpush1.bf16.msra.mxu0 0
    %366 = vmatprep.subr.bf16.mxu0 0
    %367 = vmatpush1.bf16.msra.mxu0 0
    %368 = vmatprep.subr.bf16.mxu0 0
    %369 = vmatpush1.bf16.msra.mxu0 0
    %370 = vmatprep.subr.bf16.mxu0 0
    %371 = vmatpush1.bf16.msra.mxu0 0
    %372 = vmatprep.subr.bf16.mxu0 0
    %373 = vmatpush1.bf16.msra.mxu0 0
    %374 = vmatprep.subr.bf16.mxu0 0
    %375 = vmatpush1.bf16.msra.mxu0 0
    %376 = vmatprep.subr.bf16.mxu0 0
    %377 = vmatpush1.bf16.msra.mxu0 0
    %378 = vmatprep.subr.bf16.mxu0 0
    %379 = vmatpush1.bf16.msra.mxu0 0
    %380 = vmatprep.subr.bf16.mxu0 0
    %381 = vmatpush1.bf16.msra.mxu0 0
    %382 = vmatprep.subr.bf16.mxu0 0
    %383 = vmatpush1.bf16.msra.mxu0 0
    %384 = vmatprep.subr.bf16.mxu0 0
    %385 = vmatpush1.bf16.msra.mxu0 0
    %386 = vmatprep.subr.bf16.mxu0 0
    %387 = vmatpush1.bf16.msra.mxu0 0
    %388 = vmatprep.mubr.bf16.mxu0 0
    %389 = vmatmul.mubr.bf16.gmra.mrb[0].mxu0 %v354
    %v390 = vpop.f32.mrb[0].mxu0
    %v391 = vadd.f32 0.0, %v390
    %v392 = vpop.f32.mrb[0].mxu0
    %v393 = vadd.f32 0.0, %v392
    %v394 = vpop.f32.mrb[0].mxu0
    %v395 = vpop.f32.mrb[0].mxu0
    %396 = vdwg.mxu0
    %v397 = vadd.f32 %v235, %v391
    %v398 = vxor.u32 %v397, 2147483648
    %v399 = vmul.f32 %v398, 1.442695
    %v400 = vpow.pop %v399
    %v401 = vadd.f32 %v400, 1.0
    %v402 = vrcp.pop %v401
    %v403 = vmul.f32 1.0, %v402
    %v404 = vlaneseq
    %v405 = vshrl.u32 %v404, 7
    %v406 = vsub.s32 0, %v405
    %v407 = vrot.slane %v226, %v406
    %v408 = vadd.f32 %v393, %v407
    %v409 = vmul.f32 %v403, %v408
    %v410 = vadd.f32 %v240, %v409
    %v411 = vtanh.pop %v410
    %v412 = vsub.f32 1.0, %v403
    %414 = vrot.lane.b32.xlu0 %v411, 64
    %v415 = vpop.permute.xlu0 %414
    %v417 = vmul.f32 %v412, %v415
    %v418 = vmul.f32 %v403, 0.0
    %v419 = vadd.f32 %v417, %v418
    %v420 = vpack.c.bf16 %v419, %v419
    %422 = vrot.lane.b32.xlu0 %v420, 64
    %v423 = vpop.permute.xlu0 %422
    %v425 = vsel %vm90, %v423, 0
    %427 = vmatprep.subr.bf16.mxu0 %v338
    %428 = vmatpush1.bf16.msra.mxu0 %v337
    %429 = vmatprep.subr.bf16.mxu0 %v340
    %430 = vmatpush1.bf16.msra.mxu0 %v339
    %431 = vmatprep.subr.bf16.mxu0 %v342
    %432 = vmatpush1.bf16.msra.mxu0 %v341
    %433 = vmatprep.subr.bf16.mxu0 %v344
    %434 = vmatpush1.bf16.msra.mxu0 %v343
    %435 = vmatprep.subr.bf16.mxu0 0
    %436 = vmatpush1.bf16.msra.mxu0 0
    %437 = vmatprep.subr.bf16.mxu0 0
    %438 = vmatpush1.bf16.msra.mxu0 0
    %439 = vmatprep.subr.bf16.mxu0 0
    %440 = vmatpush1.bf16.msra.mxu0 0
    %441 = vmatprep.subr.bf16.mxu0 0
    %442 = vmatpush1.bf16.msra.mxu0 0
    %443 = vmatprep.subr.bf16.mxu0 0
    %444 = vmatpush1.bf16.msra.mxu0 0
    %445 = vmatprep.subr.bf16.mxu0 0
    %446 = vmatpush1.bf16.msra.mxu0 0
    %447 = vmatprep.subr.bf16.mxu0 0
    %448 = vmatpush1.bf16.msra.mxu0 0
    %449 = vmatprep.subr.bf16.mxu0 0
    %450 = vmatpush1.bf16.msra.mxu0 0
    %451 = vmatprep.subr.bf16.mxu0 0
    %452 = vmatpush1.bf16.msra.mxu0 0
    %453 = vmatprep.subr.bf16.mxu0 0
    %454 = vmatpush1.bf16.msra.mxu0 0
    %455 = vmatprep.subr.bf16.mxu0 0
    %456 = vmatpush1.bf16.msra.mxu0 0
    %457 = vmatprep.subr.bf16.mxu0 0
    %458 = vmatpush1.bf16.msra.mxu0 0
    %459 = vmatprep.mubr.bf16.mxu0 0
    %460 = vmatmul.mubr.bf16.gmra.mrb[0].mxu0 %v425
    %v461 = vpop.f32.mrb[0].mxu0
    %v462 = vadd.f32 0.0, %v461
    %v463 = vpop.f32.mrb[0].mxu0
    %v464 = vadd.f32 0.0, %v463
    %v465 = vpop.f32.mrb[0].mxu0
    %v466 = vpop.f32.mrb[0].mxu0
    %467 = vdwg.mxu0
    %v468 = vadd.f32 %v249, %v462
    %v469 = vxor.u32 %v468, 2147483648
    %v470 = vmul.f32 %v469, 1.442695
    %v471 = vpow.pop %v470
    %v472 = vadd.f32 %v471, 1.0
    %v473 = vrcp.pop %v472
    %v474 = vmul.f32 1.0, %v473
    %v475 = vadd.f32 %v464, %v407
    %v476 = vmul.f32 %v474, %v475
    %v477 = vadd.f32 %v256, %v476
    %v478 = vtanh.pop %v477
    %v479 = vsub.f32 1.0, %v474
    %481 = vrot.lane.b32.xlu0 %v478, 64
    %v482 = vpop.permute.xlu0 %481
    %v484 = vmul.f32 %v479, %v482
    %v485 = vmul.f32 %v474, %v419
    %v486 = vadd.f32 %v484, %v485
    %v487 = vpack.c.bf16 %v486, %v486
    %489 = vrot.lane.b32.xlu0 %v487, 64
    %v490 = vpop.permute.xlu0 %489
    %v492 = vsel %vm90, %v490, 0
    %494 = vmatprep.subr.bf16.mxu0 %v338
    %495 = vmatpush1.bf16.msra.mxu0 %v337
    %496 = vmatprep.subr.bf16.mxu0 %v340
    %497 = vmatpush1.bf16.msra.mxu0 %v339
    %498 = vmatprep.subr.bf16.mxu0 %v342
    %499 = vmatpush1.bf16.msra.mxu0 %v341
    %500 = vmatprep.subr.bf16.mxu0 %v344
    %501 = vmatpush1.bf16.msra.mxu0 %v343
    %502 = vmatprep.subr.bf16.mxu0 0
    %503 = vmatpush1.bf16.msra.mxu0 0
    %504 = vmatprep.subr.bf16.mxu0 0
    %505 = vmatpush1.bf16.msra.mxu0 0
    %506 = vmatprep.subr.bf16.mxu0 0
    %507 = vmatpush1.bf16.msra.mxu0 0
    %508 = vmatprep.subr.bf16.mxu0 0
    %509 = vmatpush1.bf16.msra.mxu0 0
    %510 = vmatprep.subr.bf16.mxu0 0
    %511 = vmatpush1.bf16.msra.mxu0 0
    %512 = vmatprep.subr.bf16.mxu0 0
    %513 = vmatpush1.bf16.msra.mxu0 0
    %514 = vmatprep.subr.bf16.mxu0 0
    %515 = vmatpush1.bf16.msra.mxu0 0
    %516 = vmatprep.subr.bf16.mxu0 0
    %517 = vmatpush1.bf16.msra.mxu0 0
    %518 = vmatprep.subr.bf16.mxu0 0
    %519 = vmatpush1.bf16.msra.mxu0 0
    %520 = vmatprep.subr.bf16.mxu0 0
    %521 = vmatpush1.bf16.msra.mxu0 0
    %522 = vmatprep.subr.bf16.mxu0 0
    %523 = vmatpush1.bf16.msra.mxu0 0
    %524 = vmatprep.subr.bf16.mxu0 0
    %525 = vmatpush1.bf16.msra.mxu0 0
    %526 = vmatprep.mubr.bf16.mxu0 0
    %527 = vmatmul.mubr.bf16.gmra.mrb[0].mxu0 %v492
    %v528 = vpop.f32.mrb[0].mxu0
    %v529 = vadd.f32 0.0, %v528
    %v530 = vpop.f32.mrb[0].mxu0
    %v531 = vadd.f32 0.0, %v530
    %v532 = vpop.f32.mrb[0].mxu0
    %v533 = vpop.f32.mrb[0].mxu0
    %534 = vdwg.mxu0
    %v535 = vadd.f32 %v260, %v529
    %v536 = vxor.u32 %v535, 2147483648
    %v537 = vmul.f32 %v536, 1.442695
    %v538 = vpow.pop %v537
    %v539 = vadd.f32 %v538, 1.0
    %v540 = vrcp.pop %v539
    %v541 = vmul.f32 1.0, %v540
    %v542 = vadd.f32 %v531, %v407
    %v543 = vmul.f32 %v541, %v542
    %v544 = vadd.f32 %v264, %v543
    %v545 = vtanh.pop %v544
    %v546 = vsub.f32 1.0, %v541
    %548 = vrot.lane.b32.xlu0 %v545, 64
    %v549 = vpop.permute.xlu0 %548
    %v551 = vmul.f32 %v546, %v549
    %v552 = vmul.f32 %v541, %v486
    %v553 = vadd.f32 %v551, %v552
    %v554 = vpack.c.bf16 %v553, %v553
    %556 = vrot.lane.b32.xlu0 %v554, 64
    %v557 = vpop.permute.xlu0 %556
    %v559 = vsel %vm90, %v557, 0
    %561 = vmatprep.subr.bf16.mxu0 %v338
    %562 = vmatpush1.bf16.msra.mxu0 %v337
    %563 = vmatprep.subr.bf16.mxu0 %v340
    %564 = vmatpush1.bf16.msra.mxu0 %v339
    %565 = vmatprep.subr.bf16.mxu0 %v342
    %566 = vmatpush1.bf16.msra.mxu0 %v341
    %567 = vmatprep.subr.bf16.mxu0 %v344
    %568 = vmatpush1.bf16.msra.mxu0 %v343
    %569 = vmatprep.subr.bf16.mxu0 0
    %570 = vmatpush1.bf16.msra.mxu0 0
    %571 = vmatprep.subr.bf16.mxu0 0
    %572 = vmatpush1.bf16.msra.mxu0 0
    %573 = vmatprep.subr.bf16.mxu0 0
    %574 = vmatpush1.bf16.msra.mxu0 0
    %575 = vmatprep.subr.bf16.mxu0 0
    %576 = vmatpush1.bf16.msra.mxu0 0
    %577 = vmatprep.subr.bf16.mxu0 0
    %578 = vmatpush1.bf16.msra.mxu0 0
    %579 = vmatprep.subr.bf16.mxu0 0
    %580 = vmatpush1.bf16.msra.mxu0 0
    %581 = vmatprep.subr.bf16.mxu0 0
    %582 = vmatpush1.bf16.msra.mxu0 0
    %583 = vmatprep.subr.bf16.mxu0 0
    %584 = vmatpush1.bf16.msra.mxu0 0
    %585 = vmatprep.subr.bf16.mxu0 0
    %586 = vmatpush1.bf16.msra.mxu0 0
    %587 = vmatprep.subr.bf16.mxu0 0
    %588 = vmatpush1.bf16.msra.mxu0 0
    %589 = vmatprep.subr.bf16.mxu0 0
    %590 = vmatpush1.bf16.msra.mxu0 0
    %591 = vmatprep.subr.bf16.mxu0 0
    %592 = vmatpush1.bf16.msra.mxu0 0
    %593 = vmatprep.mubr.bf16.mxu0 0
    %594 = vmatmul.mubr.bf16.gmra.mrb[0].mxu0 %v559
    %v595 = vpop.f32.mrb[0].mxu0
    %v596 = vadd.f32 0.0, %v595
    %v597 = vpop.f32.mrb[0].mxu0
    %v598 = vadd.f32 0.0, %v597
    %v599 = vpop.f32.mrb[0].mxu0
    %v600 = vpop.f32.mrb[0].mxu0
    %601 = vdwg.mxu0
    %v602 = vadd.f32 %v267, %v596
    %v603 = vxor.u32 %v602, 2147483648
    %v604 = vmul.f32 %v603, 1.442695
    %v605 = vpow.pop %v604
    %v606 = vadd.f32 %v605, 1.0
    %v607 = vrcp.pop %v606
    %v608 = vmul.f32 1.0, %v607
    %v609 = vadd.f32 %v598, %v407
    %v610 = vmul.f32 %v608, %v609
    %v611 = vadd.f32 %v270, %v610
    %v612 = vtanh.pop %v611
    %v613 = vsub.f32 1.0, %v608
    %615 = vrot.lane.b32.xlu0 %v612, 64
    %v616 = vpop.permute.xlu0 %615
    %v618 = vmul.f32 %v613, %v616
    %v619 = vmul.f32 %v608, %v553
    %v620 = vadd.f32 %v618, %v619
    %v621 = vpack.c.bf16 %v620, %v620
    %623 = vrot.lane.b32.xlu0 %v621, 64
    %v624 = vpop.permute.xlu0 %623
    %v626 = vsel %vm90, %v624, 0
    %628 = vmatprep.subr.bf16.mxu0 %v338
    %629 = vmatpush1.bf16.msra.mxu0 %v337
    %630 = vmatprep.subr.bf16.mxu0 %v340
    %631 = vmatpush1.bf16.msra.mxu0 %v339
    %632 = vmatprep.subr.bf16.mxu0 %v342
    %633 = vmatpush1.bf16.msra.mxu0 %v341
    %634 = vmatprep.subr.bf16.mxu0 %v344
    %635 = vmatpush1.bf16.msra.mxu0 %v343
    %636 = vmatprep.subr.bf16.mxu0 0
    %637 = vmatpush1.bf16.msra.mxu0 0
    %638 = vmatprep.subr.bf16.mxu0 0
    %639 = vmatpush1.bf16.msra.mxu0 0
    %640 = vmatprep.subr.bf16.mxu0 0
    %641 = vmatpush1.bf16.msra.mxu0 0
    %642 = vmatprep.subr.bf16.mxu0 0
    %643 = vmatpush1.bf16.msra.mxu0 0
    %644 = vmatprep.subr.bf16.mxu0 0
    %645 = vmatpush1.bf16.msra.mxu0 0
    %646 = vmatprep.subr.bf16.mxu0 0
    %647 = vmatpush1.bf16.msra.mxu0 0
    %648 = vmatprep.subr.bf16.mxu0 0
    %649 = vmatpush1.bf16.msra.mxu0 0
    %650 = vmatprep.subr.bf16.mxu0 0
    %651 = vmatpush1.bf16.msra.mxu0 0
    %652 = vmatprep.subr.bf16.mxu0 0
    %653 = vmatpush1.bf16.msra.mxu0 0
    %654 = vmatprep.subr.bf16.mxu0 0
    %655 = vmatpush1.bf16.msra.mxu0 0
    %656 = vmatprep.subr.bf16.mxu0 0
    %657 = vmatpush1.bf16.msra.mxu0 0
    %658 = vmatprep.subr.bf16.mxu0 0
    %659 = vmatpush1.bf16.msra.mxu0 0
    %660 = vmatprep.mubr.bf16.mxu0 0
    %661 = vmatmul.mubr.bf16.gmra.mrb[0].mxu0 %v626
    %v662 = vpop.f32.mrb[0].mxu0
    %v663 = vadd.f32 0.0, %v662
    %v664 = vpop.f32.mrb[0].mxu0
    %v665 = vadd.f32 0.0, %v664
    %v666 = vpop.f32.mrb[0].mxu0
    %v667 = vpop.f32.mrb[0].mxu0
    %668 = vdwg.mxu0
    %v669 = vadd.f32 %v277, %v663
    %v670 = vxor.u32 %v669, 2147483648
    %v671 = vmul.f32 %v670, 1.442695
    %v672 = vpow.pop %v671
    %v673 = vadd.f32 %v672, 1.0
    %v674 = vrcp.pop %v673
    %v675 = vmul.f32 1.0, %v674
    %v676 = vadd.f32 %v665, %v407
    %v677 = vmul.f32 %v675, %v676
    %v678 = vadd.f32 %v282, %v677
    %v679 = vtanh.pop %v678
    %v680 = vsub.f32 1.0, %v675
    %682 = vrot.lane.b32.xlu0 %v679, 64
    %v683 = vpop.permute.xlu0 %682
    %v685 = vmul.f32 %v680, %v683
    %v686 = vmul.f32 %v675, %v620
    %v687 = vadd.f32 %v685, %v686
    %v688 = vpack.c.bf16 %v687, %v687
    %690 = vrot.lane.b32.xlu0 %v688, 64
    %v691 = vpop.permute.xlu0 %690
    %v693 = vsel %vm90, %v691, 0
    %695 = vmatprep.subr.bf16.mxu0 %v338
    %696 = vmatpush1.bf16.msra.mxu0 %v337
    %697 = vmatprep.subr.bf16.mxu0 %v340
    %698 = vmatpush1.bf16.msra.mxu0 %v339
    %699 = vmatprep.subr.bf16.mxu0 %v342
    %700 = vmatpush1.bf16.msra.mxu0 %v341
    %701 = vmatprep.subr.bf16.mxu0 %v344
    %702 = vmatpush1.bf16.msra.mxu0 %v343
    %703 = vmatprep.subr.bf16.mxu0 0
    %704 = vmatpush1.bf16.msra.mxu0 0
    %705 = vmatprep.subr.bf16.mxu0 0
    %706 = vmatpush1.bf16.msra.mxu0 0
    %707 = vmatprep.subr.bf16.mxu0 0
    %708 = vmatpush1.bf16.msra.mxu0 0
    %709 = vmatprep.subr.bf16.mxu0 0
    %710 = vmatpush1.bf16.msra.mxu0 0
    %711 = vmatprep.subr.bf16.mxu0 0
    %712 = vmatpush1.bf16.msra.mxu0 0
    %713 = vmatprep.subr.bf16.mxu0 0
    %714 = vmatpush1.bf16.msra.mxu0 0
    %715 = vmatprep.subr.bf16.mxu0 0
    %716 = vmatpush1.bf16.msra.mxu0 0
    %717 = vmatprep.subr.bf16.mxu0 0
    %718 = vmatpush1.bf16.msra.mxu0 0
    %719 = vmatprep.subr.bf16.mxu0 0
    %720 = vmatpush1.bf16.msra.mxu0 0
    %721 = vmatprep.subr.bf16.mxu0 0
    %722 = vmatpush1.bf16.msra.mxu0 0
    %723 = vmatprep.subr.bf16.mxu0 0
    %724 = vmatpush1.bf16.msra.mxu0 0
    %725 = vmatprep.subr.bf16.mxu0 0
    %726 = vmatpush1.bf16.msra.mxu0 0
    %727 = vmatprep.mubr.bf16.mxu0 0
    %728 = vmatmul.mubr.bf16.gmra.mrb[0].mxu0 %v693
    %v729 = vpop.f32.mrb[0].mxu0
    %v730 = vadd.f32 0.0, %v729
    %v731 = vpop.f32.mrb[0].mxu0
    %v732 = vadd.f32 0.0, %v731
    %v733 = vpop.f32.mrb[0].mxu0
    %v734 = vpop.f32.mrb[0].mxu0
    %735 = vdwg.mxu0
    %v736 = vadd.f32 %v291, %v730
    %v737 = vxor.u32 %v736, 2147483648
    %v738 = vmul.f32 %v737, 1.442695
    %v739 = vpow.pop %v738
    %v740 = vadd.f32 %v739, 1.0
    %v741 = vrcp.pop %v740
    %v742 = vmul.f32 1.0, %v741
    %v743 = vadd.f32 %v732, %v407
    %v744 = vmul.f32 %v742, %v743
    %v745 = vadd.f32 %v298, %v744
    %v746 = vtanh.pop %v745
    %v747 = vsub.f32 1.0, %v742
    %749 = vrot.lane.b32.xlu0 %v746, 64
    %v750 = vpop.permute.xlu0 %749
    %v752 = vmul.f32 %v747, %v750
    %v753 = vmul.f32 %v742, %v687
    %v754 = vadd.f32 %v752, %v753
    %v755 = vpack.c.bf16 %v754, %v754
    %757 = vrot.lane.b32.xlu0 %v755, 64
    %v758 = vpop.permute.xlu0 %757
    %v760 = vsel %vm90, %v758, 0
    %762 = vmatprep.subr.bf16.mxu0 %v338
    %763 = vmatpush1.bf16.msra.mxu0 %v337
    %764 = vmatprep.subr.bf16.mxu0 %v340
    %765 = vmatpush1.bf16.msra.mxu0 %v339
    %766 = vmatprep.subr.bf16.mxu0 %v342
    %767 = vmatpush1.bf16.msra.mxu0 %v341
    %768 = vmatprep.subr.bf16.mxu0 %v344
    %769 = vmatpush1.bf16.msra.mxu0 %v343
    %770 = vmatprep.subr.bf16.mxu0 0
    %771 = vmatpush1.bf16.msra.mxu0 0
    %772 = vmatprep.subr.bf16.mxu0 0
    %773 = vmatpush1.bf16.msra.mxu0 0
    %774 = vmatprep.subr.bf16.mxu0 0
    %775 = vmatpush1.bf16.msra.mxu0 0
    %776 = vmatprep.subr.bf16.mxu0 0
    %777 = vmatpush1.bf16.msra.mxu0 0
    %778 = vmatprep.subr.bf16.mxu0 0
    %779 = vmatpush1.bf16.msra.mxu0 0
    %780 = vmatprep.subr.bf16.mxu0 0
    %781 = vmatpush1.bf16.msra.mxu0 0
    %782 = vmatprep.subr.bf16.mxu0 0
    %783 = vmatpush1.bf16.msra.mxu0 0
    %784 = vmatprep.subr.bf16.mxu0 0
    %785 = vmatpush1.bf16.msra.mxu0 0
    %786 = vmatprep.subr.bf16.mxu0 0
    %787 = vmatpush1.bf16.msra.mxu0 0
    %788 = vmatprep.subr.bf16.mxu0 0
    %789 = vmatpush1.bf16.msra.mxu0 0
    %790 = vmatprep.subr.bf16.mxu0 0
    %791 = vmatpush1.bf16.msra.mxu0 0
    %792 = vmatprep.subr.bf16.mxu0 0
    %793 = vmatpush1.bf16.msra.mxu0 0
    %794 = vmatprep.mubr.bf16.mxu0 0
    %795 = vmatmul.mubr.bf16.gmra.mrb[0].mxu0 %v760
    %v796 = vpop.f32.mrb[0].mxu0
    %v797 = vadd.f32 0.0, %v796
    %v798 = vpop.f32.mrb[0].mxu0
    %v799 = vadd.f32 0.0, %v798
    %v800 = vpop.f32.mrb[0].mxu0
    %v801 = vpop.f32.mrb[0].mxu0
    %802 = vdwg.mxu0
    %v803 = vadd.f32 %v302, %v797
    %v804 = vxor.u32 %v803, 2147483648
    %v805 = vmul.f32 %v804, 1.442695
    %v806 = vpow.pop %v805
    %v807 = vadd.f32 %v806, 1.0
    %v808 = vrcp.pop %v807
    %v809 = vmul.f32 1.0, %v808
    %v810 = vadd.f32 %v799, %v407
    %v811 = vmul.f32 %v809, %v810
    %v812 = vadd.f32 %v306, %v811
    %v813 = vtanh.pop %v812
    %v814 = vsub.f32 1.0, %v809
    %816 = vrot.lane.b32.xlu0 %v813, 64
    %v817 = vpop.permute.xlu0 %816
    %v819 = vmul.f32 %v814, %v817
    %v820 = vmul.f32 %v809, %v754
    %v821 = vadd.f32 %v819, %v820
    %v822 = vpack.c.bf16 %v821, %v821
    %824 = vrot.lane.b32.xlu0 %v822, 64
    %v825 = vpop.permute.xlu0 %824
    %v827 = vsel %vm90, %v825, 0
    %829 = vmatprep.subr.bf16.mxu0 %v338
    %830 = vmatpush1.bf16.msra.mxu0 %v337
    %831 = vmatprep.subr.bf16.mxu0 %v340
    %832 = vmatpush1.bf16.msra.mxu0 %v339
    %833 = vmatprep.subr.bf16.mxu0 %v342
    %834 = vmatpush1.bf16.msra.mxu0 %v341
    %835 = vmatprep.subr.bf16.mxu0 %v344
    %836 = vmatpush1.bf16.msra.mxu0 %v343
    %837 = vmatprep.subr.bf16.mxu0 0
    %838 = vmatpush1.bf16.msra.mxu0 0
    %839 = vmatprep.subr.bf16.mxu0 0
    %840 = vmatpush1.bf16.msra.mxu0 0
    %841 = vmatprep.subr.bf16.mxu0 0
    %842 = vmatpush1.bf16.msra.mxu0 0
    %843 = vmatprep.subr.bf16.mxu0 0
    %844 = vmatpush1.bf16.msra.mxu0 0
    %845 = vmatprep.subr.bf16.mxu0 0
    %846 = vmatpush1.bf16.msra.mxu0 0
    %847 = vmatprep.subr.bf16.mxu0 0
    %848 = vmatpush1.bf16.msra.mxu0 0
    %849 = vmatprep.subr.bf16.mxu0 0
    %850 = vmatpush1.bf16.msra.mxu0 0
    %851 = vmatprep.subr.bf16.mxu0 0
    %852 = vmatpush1.bf16.msra.mxu0 0
    %853 = vmatprep.subr.bf16.mxu0 0
    %854 = vmatpush1.bf16.msra.mxu0 0
    %855 = vmatprep.subr.bf16.mxu0 0
    %856 = vmatpush1.bf16.msra.mxu0 0
    %857 = vmatprep.subr.bf16.mxu0 0
    %858 = vmatpush1.bf16.msra.mxu0 0
    %859 = vmatprep.subr.bf16.mxu0 0
    %860 = vmatpush1.bf16.msra.mxu0 0
    %861 = vmatprep.mubr.bf16.mxu0 0
    %862 = vmatmul.mubr.bf16.gmra.mrb[0].mxu0 %v827
    %v863 = vpop.f32.mrb[0].mxu0
    %v864 = vadd.f32 0.0, %v863
    %v865 = vpop.f32.mrb[0].mxu0
    %v866 = vadd.f32 0.0, %v865
    %v867 = vpop.f32.mrb[0].mxu0
    %v868 = vpop.f32.mrb[0].mxu0
    %869 = vdwg.mxu0
    %v870 = vadd.f32 %v309, %v864
    %v871 = vxor.u32 %v870, 2147483648
    %v872 = vmul.f32 %v871, 1.442695
    %v873 = vpow.pop %v872
    %v874 = vadd.f32 %v873, 1.0
    %v875 = vrcp.pop %v874
    %v876 = vmul.f32 1.0, %v875
    %v877 = vadd.f32 %v866, %v407
    %v878 = vmul.f32 %v876, %v877
    %v879 = vadd.f32 %v312, %v878
    %v880 = vtanh.pop %v879
    %v881 = vsub.f32 1.0, %v876
    %883 = vrot.lane.b32.xlu0 %v880, 64
    %v884 = vpop.permute.xlu0 %883
    %v886 = vmul.f32 %v881, %v884
    %v887 = vmul.f32 %v876, %v821
    %v888 = vadd.f32 %v886, %v887
    %890 = vrot.lane.b32.xlu0 %v419, 64
    %v891 = vpop.permute.xlu0 %890
    %894 = vrot.lane.b32.xlu0 %v553, 64
    %v895 = vpop.permute.xlu0 %894
    %898 = vrot.lane.b32.xlu0 %v687, 64
    %v899 = vpop.permute.xlu0 %898
    %902 = vrot.lane.b32.xlu0 %v821, 64
    %v903 = vpop.permute.xlu0 %902
    %v905 = vsel %vm90, %v891, %v486
    %v906 = vsel %vm90, %v895, %v620
    %v907 = vsel %vm90, %v899, %v754
    %v908 = vsel %vm90, %v903, %v888
    %v909 = vld [vmem:[%s2] sm:$0xff]
    %v910 = vld [vmem:[%s2 + $0x8] sm:$0xff]
    %v911 = vld [vmem:[%s2 + $0x10] sm:$0xff]
    %v912 = vld [vmem:[%s2 + $0x18] sm:$0xff]
    %v913 = vld [vmem:[%s2 + $0x20] sm:$0xff]
    %v914 = vld [vmem:[%s2 + $0x28] sm:$0xff]
    %v915 = vld [vmem:[%s2 + $0x30] sm:$0xff]
    %v916 = vld [vmem:[%s2 + $0x38] sm:$0xff]
    %v917 = vld [vmem:[%s2 + $0x40] sm:$0xff]
    %v918 = vld [vmem:[%s2 + $0x48] sm:$0xff]
    %v919 = vld [vmem:[%s2 + $0x50] sm:$0xff]
    %v920 = vld [vmem:[%s2 + $0x58] sm:$0xff]
    %v921 = vld [vmem:[%s2 + $0x60] sm:$0xff]
    %v922 = vld [vmem:[%s2 + $0x68] sm:$0xff]
    %v923 = vld [vmem:[%s2 + $0x70] sm:$0xff]
    %v924 = vld [vmem:[%s2 + $0x78] sm:$0xff]
    %v925 = vld [vmem:[%s2 + $0x80] sm:$0xff]
    %v926 = vld [vmem:[%s2 + $0x88] sm:$0xff]
    %v927 = vld [vmem:[%s2 + $0x90] sm:$0xff]
    %v928 = vld [vmem:[%s2 + $0x98] sm:$0xff]
    %v929 = vld [vmem:[%s2 + $0xa0] sm:$0xff]
    %v930 = vld [vmem:[%s2 + $0xa8] sm:$0xff]
    %v931 = vld [vmem:[%s2 + $0xb0] sm:$0xff]
    %v932 = vld [vmem:[%s2 + $0xb8] sm:$0xff]
    %v933 = vld [vmem:[%s2 + $0xc0] sm:$0xff]
    %v934 = vld [vmem:[%s2 + $0xc8] sm:$0xff]
    %v935 = vld [vmem:[%s2 + $0xd0] sm:$0xff]
    %v936 = vld [vmem:[%s2 + $0xd8] sm:$0xff]
    %v937 = vld [vmem:[%s2 + $0xe0] sm:$0xff]
    %v938 = vld [vmem:[%s2 + $0xe8] sm:$0xff]
    %v939 = vld [vmem:[%s2 + $0xf0] sm:$0xff]
    %v940 = vld [vmem:[%s2 + $0xf8] sm:$0xff]
    %v941 = vld [vmem:[%s2 + $0x100] sm:$0xff]
    %v942 = vld [vmem:[%s2 + $0x108] sm:$0xff]
    %v943 = vld [vmem:[%s2 + $0x110] sm:$0xff]
    %v944 = vld [vmem:[%s2 + $0x118] sm:$0xff]
    %v945 = vld [vmem:[%s2 + $0x120] sm:$0xff]
    %v946 = vld [vmem:[%s2 + $0x128] sm:$0xff]
    %v947 = vld [vmem:[%s2 + $0x130] sm:$0xff]
    %v948 = vld [vmem:[%s2 + $0x138] sm:$0xff]
    %v949 = vld [vmem:[%s2 + $0x140] sm:$0xff]
    %v950 = vld [vmem:[%s2 + $0x148] sm:$0xff]
    %v951 = vld [vmem:[%s2 + $0x150] sm:$0xff]
    %v952 = vld [vmem:[%s2 + $0x158] sm:$0xff]
    %v953 = vld [vmem:[%s2 + $0x160] sm:$0xff]
    %v954 = vld [vmem:[%s2 + $0x168] sm:$0xff]
    %v955 = vld [vmem:[%s2 + $0x170] sm:$0xff]
    %v956 = vld [vmem:[%s2 + $0x178] sm:$0xff]
    %v957 = vld [vmem:[%s2 + $0x180] sm:$0xff]
    %v958 = vld [vmem:[%s2 + $0x188] sm:$0xff]
    %v959 = vld [vmem:[%s2 + $0x190] sm:$0xff]
    %v960 = vld [vmem:[%s2 + $0x198] sm:$0xff]
    %v961 = vld [vmem:[%s2 + $0x1a0] sm:$0xff]
    %v962 = vld [vmem:[%s2 + $0x1a8] sm:$0xff]
    %v963 = vld [vmem:[%s2 + $0x1b0] sm:$0xff]
    %v964 = vld [vmem:[%s2 + $0x1b8] sm:$0xff]
    %v965 = vld [vmem:[%s2 + $0x1c0] sm:$0xff]
    %v966 = vld [vmem:[%s2 + $0x1c8] sm:$0xff]
    %v967 = vld [vmem:[%s2 + $0x1d0] sm:$0xff]
    %v968 = vld [vmem:[%s2 + $0x1d8] sm:$0xff]
    %v969 = vld [vmem:[%s2 + $0x1e0] sm:$0xff]
    %v970 = vld [vmem:[%s2 + $0x1e8] sm:$0xff]
    %v971 = vld [vmem:[%s2 + $0x1f0] sm:$0xff]
    %v972 = vld [vmem:[%s2 + $0x1f8] sm:$0xff]
    %v973 = vld [vmem:[%s2 + $0x200] sm:$0x3]
    %974 = vmatprep.subr.mxu0 0.0
    %975 = vmatpush1.msra.mxu0 %v909
    %976 = vmatprep.subr.mxu0 0.0
    %977 = vmatpush1.msra.mxu0 %v910
    %978 = vmatprep.subr.mxu0 0.0
    %979 = vmatpush1.msra.mxu0 %v911
    %980 = vmatprep.subr.mxu0 0.0
    %981 = vmatpush1.msra.mxu0 %v912
    %982 = vmatprep.subr.mxu0 0.0
    %983 = vmatpush1.msra.mxu0 %v913
    %984 = vmatprep.subr.mxu0 0.0
    %985 = vmatpush1.msra.mxu0 %v914
    %986 = vmatprep.subr.mxu0 0.0
    %987 = vmatpush1.msra.mxu0 %v915
    %988 = vmatprep.subr.mxu0 0.0
    %989 = vmatpush1.msra.mxu0 %v916
    %990 = vmatprep.subr.mxu0 0.0
    %991 = vmatpush1.msra.mxu0 %v917
    %992 = vmatprep.subr.mxu0 0.0
    %993 = vmatpush1.msra.mxu0 %v918
    %994 = vmatprep.subr.mxu0 0.0
    %995 = vmatpush1.msra.mxu0 %v919
    %996 = vmatprep.subr.mxu0 0.0
    %997 = vmatpush1.msra.mxu0 %v920
    %998 = vmatprep.subr.mxu0 0.0
    %999 = vmatpush1.msra.mxu0 %v921
    %1000 = vmatprep.subr.mxu0 0.0
    %1001 = vmatpush1.msra.mxu0 %v922
    %1002 = vmatprep.subr.mxu0 0.0
    %1003 = vmatpush1.msra.mxu0 %v923
    %1004 = vmatprep.subr.mxu0 0.0
    %1005 = vmatpush1.msra.mxu0 %v924
    %1006 = vmatprep.subr.mxu0 0.0
    %1007 = vmatpush1.msra.mxu0 %v925
    %1008 = vmatprep.subr.mxu0 0.0
    %1009 = vmatpush1.msra.mxu0 %v926
    %1010 = vmatprep.subr.mxu0 0.0
    %1011 = vmatpush1.msra.mxu0 %v927
    %1012 = vmatprep.subr.mxu0 0.0
    %1013 = vmatpush1.msra.mxu0 %v928
    %1014 = vmatprep.subr.mxu0 0.0
    %1015 = vmatpush1.msra.mxu0 %v929
    %1016 = vmatprep.subr.mxu0 0.0
    %1017 = vmatpush1.msra.mxu0 %v930
    %1018 = vmatprep.subr.mxu0 0.0
    %1019 = vmatpush1.msra.mxu0 %v931
    %1020 = vmatprep.subr.mxu0 0.0
    %1021 = vmatpush1.msra.mxu0 %v932
    %1022 = vmatprep.subr.mxu0 0.0
    %1023 = vmatpush1.msra.mxu0 %v933
    %1024 = vmatprep.subr.mxu0 0.0
    %1025 = vmatpush1.msra.mxu0 %v934
    %1026 = vmatprep.subr.mxu0 0.0
    %1027 = vmatpush1.msra.mxu0 %v935
    %1028 = vmatprep.subr.mxu0 0.0
    %1029 = vmatpush1.msra.mxu0 %v936
    %1030 = vmatprep.subr.mxu0 0.0
    %1031 = vmatpush1.msra.mxu0 %v937
    %1032 = vmatprep.subr.mxu0 0.0
    %1033 = vmatpush1.msra.mxu0 %v938
    %1034 = vmatprep.subr.mxu0 0.0
    %1035 = vmatpush1.msra.mxu0 %v939
    %1036 = vmatprep.subr.mxu0 0.0
    %1037 = vmatpush1.msra.mxu0 %v940
    %1038 = vmatprep.mubr.f32.mxu0 %v906
    %1039 = vmatmul.mubr.f32.gmra.mrb[0].mxu0 %v905
    %v1040 = vpop.f32.mrb[0].mxu0
    %v1041 = vadd.f32 0.0, %v1040
    %v1042 = vpop.f32.mrb[0].mxu0
    %1043 = vdwg.mxu0
    %1044 = vmatprep.subr.mxu0 0.0
    %1045 = vmatpush1.msra.mxu0 %v941
    %1046 = vmatprep.subr.mxu0 0.0
    %1047 = vmatpush1.msra.mxu0 %v942
    %1048 = vmatprep.subr.mxu0 0.0
    %1049 = vmatpush1.msra.mxu0 %v943
    %1050 = vmatprep.subr.mxu0 0.0
    %1051 = vmatpush1.msra.mxu0 %v944
    %1052 = vmatprep.subr.mxu0 0.0
    %1053 = vmatpush1.msra.mxu0 %v945
    %1054 = vmatprep.subr.mxu0 0.0
    %1055 = vmatpush1.msra.mxu0 %v946
    %1056 = vmatprep.subr.mxu0 0.0
    %1057 = vmatpush1.msra.mxu0 %v947
    %1058 = vmatprep.subr.mxu0 0.0
    %1059 = vmatpush1.msra.mxu0 %v948
    %1060 = vmatprep.subr.mxu0 0.0
    %1061 = vmatpush1.msra.mxu0 %v949
    %1062 = vmatprep.subr.mxu0 0.0
    %1063 = vmatpush1.msra.mxu0 %v950
    %1064 = vmatprep.subr.mxu0 0.0
    %1065 = vmatpush1.msra.mxu0 %v951
    %1066 = vmatprep.subr.mxu0 0.0
    %1067 = vmatpush1.msra.mxu0 %v952
    %1068 = vmatprep.subr.mxu0 0.0
    %1069 = vmatpush1.msra.mxu0 %v953
    %1070 = vmatprep.subr.mxu0 0.0
    %1071 = vmatpush1.msra.mxu0 %v954
    %1072 = vmatprep.subr.mxu0 0.0
    %1073 = vmatpush1.msra.mxu0 %v955
    %1074 = vmatprep.subr.mxu0 0.0
    %1075 = vmatpush1.msra.mxu0 %v956
    %1076 = vmatprep.subr.mxu0 0.0
    %1077 = vmatpush1.msra.mxu0 %v957
    %1078 = vmatprep.subr.mxu0 0.0
    %1079 = vmatpush1.msra.mxu0 %v958
    %1080 = vmatprep.subr.mxu0 0.0
    %1081 = vmatpush1.msra.mxu0 %v959
    %1082 = vmatprep.subr.mxu0 0.0
    %1083 = vmatpush1.msra.mxu0 %v960
    %1084 = vmatprep.subr.mxu0 0.0
    %1085 = vmatpush1.msra.mxu0 %v961
    %1086 = vmatprep.subr.mxu0 0.0
    %1087 = vmatpush1.msra.mxu0 %v962
    %1088 = vmatprep.subr.mxu0 0.0
    %1089 = vmatpush1.msra.mxu0 %v963
    %1090 = vmatprep.subr.mxu0 0.0
    %1091 = vmatpush1.msra.mxu0 %v964
    %1092 = vmatprep.subr.mxu0 0.0
    %1093 = vmatpush1.msra.mxu0 %v965
    %1094 = vmatprep.subr.mxu0 0.0
    %1095 = vmatpush1.msra.mxu0 %v966
    %1096 = vmatprep.subr.mxu0 0.0
    %1097 = vmatpush1.msra.mxu0 %v967
    %1098 = vmatprep.subr.mxu0 0.0
    %1099 = vmatpush1.msra.mxu0 %v968
    %1100 = vmatprep.subr.mxu0 0.0
    %1101 = vmatpush1.msra.mxu0 %v969
    %1102 = vmatprep.subr.mxu0 0.0
    %1103 = vmatpush1.msra.mxu0 %v970
    %1104 = vmatprep.subr.mxu0 0.0
    %1105 = vmatpush1.msra.mxu0 %v971
    %1106 = vmatprep.subr.mxu0 0.0
    %1107 = vmatpush1.msra.mxu0 %v972
    %1108 = vmatprep.mubr.f32.mxu0 %v908
    %1109 = vmatmul.mubr.f32.gmra.mrb[0].mxu0 %v907
    %v1110 = vpop.f32.mrb[0].mxu0
    %v1111 = vadd.f32 %v1041, %v1110
    %v1112 = vpop.f32.mrb[0].mxu0
    %1113 = vdwg.mxu0
    %v1114 = vadd.f32 %v973, %v1111
    %vm1115 = vcmask 58368
    %1116 = vst.msk [vmem:[#allocation2] sm:$0x3] %vm1115, %v1114
    // Predicated region
    $region14: #{selector_forward.1} parent=1 // pred_check
      _
    $region15: #{selector_forward.1} parent=1 // pred_check_branch
      %1118 = sbr.rel (0) target = $region17
    $region16: #{selector_forward.1} parent=1 // pred_region
      %s1120 = ssub.s32 32, 32
      %1121 = vsyncadd [#allocation3], %s1120
      %s1123 = sshll.u32 [#allocation2], 4
      %s1124 = int_to_ptr.vmem [resolvable:$true] %s1123
      %1126 = dma.vmem_to_hbm [thread:$0]  %s1124, 32, %s3, [#allocation3]
    $region17: #{selector_forward.1} parent=1 // pred_fallthru
      _
    // Predicated region
    $region18: #{selector_forward.1} parent=1 // pred_check
      _
    $region19: #{selector_forward.1} parent=1 // pred_check_branch
      %1128 = sbr.rel (0) target = $region21
    $region20: #{selector_forward.1} parent=1 // pred_region
      %1129 = dma.done [#allocation3], 32
    $region21: #{selector_forward.1} parent=1 // pred_fallthru
      _
    %1130 = vsyncpa [#allocation3], 1

</llo_original>
